<compile_context>
chip_gen: v7x
topology: tpu7x:2x2x1
jax: 0.10.0
libtpu: 0.0.40
codegen_flags: <defaults>
</compile_context>

<pallas_src>
import math
import numpy as np
import jax
import jax.numpy as jnp
from jax.experimental import pallas as pl
from jax.experimental.pallas import tpu as pltpu


# ----------------------------- configuration --------------------------------
DIM_IN = 3
DIM_OUT = 4
CONFIG = {
    "dim_cond": 8,
    "n_neurons": 128,        # lane-dense hidden width
    "n_hidden_layers": 4,
    "sphere_init": False,    # False -> ReLU activation (PyTorch default path)
    "skip_in": (2,),         # layer 2 gets cat([h, coords]) / sqrt(2)
    "cond_in": (0,),         # layer 0 gets cat([x, cond])
}
# TODO(synk): nn.utils.weight_norm and the sphere_init / last_layer_zeros inits only
# change how weights are *initialized*; forward math is identical, so they are not
# replicated here (weights are generated directly).


def _mlp_dims(dim_in, dim_out, cfg):
    n_neurons = cfg.get("n_neurons", 256)
    n_hidden = cfg.get("n_hidden_layers", 8)
    return [dim_in] + [n_neurons] * n_hidden + [dim_out]


def init_params(key, dim_in, dim_out, cfg):
    """Per-layer (W, b) with W stored as (in_features, out_features)."""
    dims = _mlp_dims(dim_in, dim_out, cfg)
    dim_cond = cfg.get("dim_cond", 0)
    skip_in = tuple(cfg.get("skip_in", ()))
    cond_in = tuple(cfg.get("cond_in", ()))
    num_layers = len(dims)
    params = []
    for l in range(num_layers - 1):
        out_dim = dims[l + 1] - dims[0] if (l + 1) in skip_in else dims[l + 1]
        in_dim = dims[l] + dim_cond if l in cond_in else dims[l]
        key, kw, kb = jax.random.split(key, 3)
        bound = 1.0 / math.sqrt(in_dim)
        w = jax.random.uniform(kw, (in_dim, out_dim), jnp.float32, -bound, bound)
        b = jax.random.uniform(kb, (out_dim,), jnp.float32, -bound, bound)
        params.append((w, b))
    return params


# ------------------------------ Pallas wrapper -------------------------------
def vanilla_cond_mlp(x, cond, params, dim_in, dim_out, cfg, *, tile_n=256):
    """x: (N, dim_in) f32, cond: (1 or N, dim_cond) f32 -> (N, dim_out) f32."""
    n = x.shape[0]
    dims = _mlp_dims(dim_in, dim_out, cfg)
    dim_cond = cfg.get("dim_cond", 0)
    skip_in = tuple(cfg.get("skip_in", ()))
    cond_in = tuple(cfg.get("cond_in", ()))
    sphere_init = cfg.get("sphere_init", False)
    num_layers = len(dims)
    assert not (set(skip_in) & set(cond_in)), \
        "a layer in both skip_in and cond_in is not supported"  # TODO(synk)

    x = x.astype(jnp.float32)
    use_cond = dim_cond > 0 and len(cond_in) > 0
    # Single-row cond (`cond.expand(N, -1)` case): its contribution is a constant
    # row -> fold into the bias, drop the cond operand from the kernel entirely.
    fold_cond = use_cond and cond.shape[0] == 1
    has_cond_input = use_cond and not fold_cond

    if has_cond_input:
        cond = jnp.broadcast_to(cond.astype(jnp.float32), (n, dim_cond))

    inv_sqrt2 = np.float32(1.0 / np.sqrt(2.0))

    # Static layer description + flat parameter list (weights split so that the
    # kernel never concatenates along the lane axis).
    layer_desc = []     # (kind, number_of_weight_parts)
    flat_params = []    # weight parts and (1, out) biases, in kernel order
    for l in range(num_layers - 1):
        w, b = params[l]
        w = jnp.asarray(w, jnp.float32)
        bias = jnp.asarray(b, jnp.float32).reshape(1, -1)
        if l in cond_in and use_cond:
            w_x, w_c = w[:dims[l], :], w[dims[l]:, :]
            if fold_cond:
                # constant cond row folded into the bias (one tiny (1,dc)@(dc,out))
                bias = bias + jnp.dot(cond.astype(jnp.float32).reshape(1, dim_cond), w_c)
                parts, kind = [w_x], "plain"
            else:
                parts, kind = [w_x, w_c], "cond"
        elif l in skip_in:
            main_w = dims[l] - dims[0]
            # fold the 1/sqrt(2) of the skip concat into the constant weights
            parts, kind = [w[:main_w, :] * inv_sqrt2, w[main_w:, :] * inv_sqrt2], "skip"
        else:
            parts, kind = [w], "plain"
        flat_params.extend(parts)
        flat_params.append(bias)
        layer_desc.append((kind, len(parts)))

    # Pad N up to a multiple of tile_n (padded rows are sliced off afterwards).
    n_pad = (-n) % tile_n
    if n_pad:
        x = jnp.pad(x, ((0, n_pad), (0, 0)))
        if has_cond_input:
            cond = jnp.pad(cond, ((0, n_pad), (0, 0)))
    n_total = n + n_pad

    last = num_layers - 2

    def kernel(*refs):
        if has_cond_input:
            x_ref, cond_ref = refs[0], refs[1]
            p_refs = refs[2:-1]
        else:
            x_ref = refs[0]
            cond_ref = None
            p_refs = refs[1:-1]
        o_ref = refs[-1]

        coords = x_ref[...]            # (tile_n, dim_in)
        h = coords
        pi = 0
        for l, (kind, n_parts) in enumerate(layer_desc):
            w_refs = p_refs[pi:pi + n_parts]
            b_ref = p_refs[pi + n_parts]
            pi += n_parts + 1

            if kind == "cond":
                z = (jnp.dot(h, w_refs[0][...], preferred_element_type=jnp.float32)
                     + jnp.dot(cond_ref[...], w_refs[1][...],
                               preferred_element_type=jnp.float32))
            elif kind == "skip":
                # 1/sqrt(2) already folded into the weight parts
                z = (jnp.dot(h, w_refs[0][...], preferred_element_type=jnp.float32)
                     + jnp.dot(coords, w_refs[1][...],
                               preferred_element_type=jnp.float32))
            else:
                z = jnp.dot(h, w_refs[0][...], preferred_element_type=jnp.float32)
            z = z + b_ref[...]

            if l < last:
                if sphere_init:
                    # Softplus(beta=100); jax.nn.softplus is overflow-safe
                    h = jax.nn.softplus(100.0 * z) * 0.01
                else:
                    h = jnp.maximum(z, 0.0)
            else:
                h = z
        o_ref[...] = h.astype(o_ref.dtype)

    grid = (n_total // tile_n,)
    inputs = [x]
    in_specs = [pl.BlockSpec((tile_n, x.shape[1]), lambda i: (i, 0))]
    if has_cond_input:
        inputs.append(cond)
        in_specs.append(pl.BlockSpec((tile_n, dim_cond), lambda i: (i, 0)))
    # Weights / biases: full-array blocks, resident in VMEM across all grid steps.
    for p in flat_params:
        inputs.append(p)
        in_specs.append(pl.BlockSpec(p.shape, lambda i: (0, 0)))
    out_specs = pl.BlockSpec((tile_n, dim_out), lambda i: (i, 0))

    out = pl.pallas_call(
        kernel,
        out_shape=jax.ShapeDtypeStruct((n_total, dim_out), jnp.float32),
        grid=grid,
        in_specs=in_specs,
        out_specs=out_specs,
        compiler_params=pltpu.CompilerParams(
            dimension_semantics=("parallel",),
        ),
    )(*inputs)

    return out[:n]


# -------------------------------- reference ----------------------------------
def vanilla_cond_mlp_ref(x, cond, params, dim_in, dim_out, cfg):
    dims = _mlp_dims(dim_in, dim_out, cfg)
    dim_cond = cfg.get("dim_cond", 0)
    skip_in = tuple(cfg.get("skip_in", ()))
    cond_in = tuple(cfg.get("cond_in", ()))
    sphere_init = cfg.get("sphere_init", False)
    num_layers = len(dims)

    if dim_cond > 0:
        cond = jnp.broadcast_to(cond, (x.shape[0], dim_cond))
    coords = x
    h = x
    for l in range(num_layers - 1):
        w, b = params[l]
        if l in cond_in:
            h = jnp.concatenate([h, cond], axis=1)
        if l in skip_in:
            h = jnp.concatenate([h, coords], axis=1) / np.sqrt(2)
        h = h @ w + b
        if l < num_layers - 2:
            h = (jax.nn.softplus(100.0 * h) / 100.0) if sphere_init else jax.nn.relu(h)
    return h


# ----------------------------------- main -------------------------------------
if __name__ == "__main__":
    key = jax.random.PRNGKey(0)
    k_x, k_c, k_p = jax.random.split(key, 3)
    params = init_params(k_p, DIM_IN, DIM_OUT, CONFIG)

    # Case 1: single-row cond (the usual `cond.expand` usage) -> cond folded into bias.
    n1 = 256
    x1 = jax.random.uniform(k_x, (n1, DIM_IN), jnp.float32, -1.0, 1.0)
    cond1 = jax.random.normal(k_c, (1, CONFIG["dim_cond"]), jnp.float32)
    out1 = jax.block_until_ready(
        vanilla_cond_mlp(x1, cond1, params, DIM_IN, DIM_OUT, CONFIG, tile_n=256))
    ref1 = vanilla_cond_mlp_ref(x1, cond1, params, DIM_IN, DIM_OUT, CONFIG)
    assert out1.shape == (n1, DIM_OUT)
    err1 = float(jnp.max(jnp.abs(out1 - ref1)))
    assert jnp.allclose(out1, ref1, atol=5e-3, rtol=5e-3), f"max abs err = {err1}"

    # Case 2: per-point cond + N not a multiple of the tile -> in-kernel split
    # matmul path + padding path.
    n2 = 200
    k_x2, k_c2 = jax.random.split(jax.random.PRNGKey(1))
    x2 = jax.random.uniform(k_x2, (n2, DIM_IN), jnp.float32, -1.0, 1.0)
    cond2 = jax.random.normal(k_c2, (n2, CONFIG["dim_cond"]), jnp.float32)
    out2 = jax.block_until_ready(
        vanilla_cond_mlp(x2, cond2, params, DIM_IN, DIM_OUT, CONFIG, tile_n=256))
    ref2 = vanilla_cond_mlp_ref(x2, cond2, params, DIM_IN, DIM_OUT, CONFIG)
    assert out2.shape == (n2, DIM_OUT)
    err2 = float(jnp.max(jnp.abs(out2 - ref2)))
    assert jnp.allclose(out2, ref2, atol=5e-3, rtol=5e-3), f"max abs err = {err2}"

    print("KERNEL_OK")
</pallas_src>

<mosaic_0001>
module attributes {stable_mosaic.version = 11 : i64} {
  func.func @kernel(%arg0: i32, %arg1: memref<256x3xf32, #tpu.memory_space<vmem>>, %arg2: memref<3x128xf32, #tpu.memory_space<vmem>>, %arg3: memref<1x128xf32, #tpu.memory_space<vmem>>, %arg4: memref<128x125xf32, #tpu.memory_space<vmem>>, %arg5: memref<1x125xf32, #tpu.memory_space<vmem>>, %arg6: memref<125x128xf32, #tpu.memory_space<vmem>>, %arg7: memref<3x128xf32, #tpu.memory_space<vmem>>, %arg8: memref<1x128xf32, #tpu.memory_space<vmem>>, %arg9: memref<128x128xf32, #tpu.memory_space<vmem>>, %arg10: memref<1x128xf32, #tpu.memory_space<vmem>>, %arg11: memref<128x4xf32, #tpu.memory_space<vmem>>, %arg12: memref<1x4xf32, #tpu.memory_space<vmem>>, %arg13: memref<256x4xf32, #tpu.memory_space<vmem>>) attributes {dimension_semantics = [#tpu.dimension_semantics<parallel>], iteration_bounds = array<i64: 1>, scalar_prefetch = 0 : i64, scratch_operands = 0 : i64, tpu.core_type = #tpu.core_type<tc>, window_params = [{transform_indices = @transform_0, window_bounds = array<i64: 256, 3>}, {pipeline_mode = #tpu.pipeline_mode<synchronous>, transform_indices = @transform_1, window_bounds = array<i64: 3, 128>}, {pipeline_mode = #tpu.pipeline_mode<synchronous>, transform_indices = @transform_2, window_bounds = array<i64: 1, 128>}, {pipeline_mode = #tpu.pipeline_mode<synchronous>, transform_indices = @transform_3, window_bounds = array<i64: 128, 125>}, {pipeline_mode = #tpu.pipeline_mode<synchronous>, transform_indices = @transform_4, window_bounds = array<i64: 1, 125>}, {pipeline_mode = #tpu.pipeline_mode<synchronous>, transform_indices = @transform_5, window_bounds = array<i64: 125, 128>}, {pipeline_mode = #tpu.pipeline_mode<synchronous>, transform_indices = @transform_6, window_bounds = array<i64: 3, 128>}, {pipeline_mode = #tpu.pipeline_mode<synchronous>, transform_indices = @transform_7, window_bounds = array<i64: 1, 128>}, {pipeline_mode = #tpu.pipeline_mode<synchronous>, transform_indices = @transform_8, window_bounds = array<i64: 128, 128>}, {pipeline_mode = #tpu.pipeline_mode<synchronous>, transform_indices = @transform_9, window_bounds = array<i64: 1, 128>}, {pipeline_mode = #tpu.pipeline_mode<synchronous>, transform_indices = @transform_10, window_bounds = array<i64: 128, 4>}, {pipeline_mode = #tpu.pipeline_mode<synchronous>, transform_indices = @transform_11, window_bounds = array<i64: 1, 4>}, {transform_indices = @transform_12, window_bounds = array<i64: 256, 4>}]} {
    %c0 = arith.constant 0 : index
    %c0_0 = arith.constant 0 : index
    %0 = vector.load %arg1[%c0, %c0_0] : memref<256x3xf32, #tpu.memory_space<vmem>>, vector<256x3xf32>
    %c0_1 = arith.constant 0 : index
    %c0_2 = arith.constant 0 : index
    %1 = vector.load %arg2[%c0_1, %c0_2] : memref<3x128xf32, #tpu.memory_space<vmem>>, vector<3x128xf32>
    %cst = arith.constant dense<0.000000e+00> : vector<256x128xf32>
    %2 = tpu.matmul %0, %1, %cst {dimension_numbers = #tpu.dot_dimension_numbers<[1], [0], [0], [1], [0, 0, 1, 1], [], []>} : vector<256x3xf32>, vector<3x128xf32>, vector<256x128xf32> -> vector<256x128xf32>
    %c0_3 = arith.constant 0 : index
    %c0_4 = arith.constant 0 : index
    %3 = vector.load %arg3[%c0_3, %c0_4] : memref<1x128xf32, #tpu.memory_space<vmem>>, vector<1x128xf32>
    %4 = vector.broadcast %3 : vector<1x128xf32> to vector<256x128xf32>
    %5 = arith.addf %2, %4 : vector<256x128xf32>
    %cst_5 = arith.constant 0.000000e+00 : f32
    %6 = vector.broadcast %cst_5 : f32 to vector<256x128xf32>
    %7 = arith.maximumf %5, %6 : vector<256x128xf32>
    %c0_6 = arith.constant 0 : index
    %c0_7 = arith.constant 0 : index
    %8 = vector.load %arg4[%c0_6, %c0_7] : memref<128x125xf32, #tpu.memory_space<vmem>>, vector<128x125xf32>
    %cst_8 = arith.constant dense<0.000000e+00> : vector<256x125xf32>
    %9 = tpu.matmul %7, %8, %cst_8 {dimension_numbers = #tpu.dot_dimension_numbers<[1], [0], [0], [1], [0, 0, 1, 1], [], []>} : vector<256x128xf32>, vector<128x125xf32>, vector<256x125xf32> -> vector<256x125xf32>
    %c0_9 = arith.constant 0 : index
    %c0_10 = arith.constant 0 : index
    %10 = vector.load %arg5[%c0_9, %c0_10] : memref<1x125xf32, #tpu.memory_space<vmem>>, vector<1x125xf32>
    %11 = vector.broadcast %10 : vector<1x125xf32> to vector<256x125xf32>
    %12 = arith.addf %9, %11 : vector<256x125xf32>
    %cst_11 = arith.constant 0.000000e+00 : f32
    %13 = vector.broadcast %cst_11 : f32 to vector<256x125xf32>
    %14 = arith.maximumf %12, %13 : vector<256x125xf32>
    %c0_12 = arith.constant 0 : index
    %c0_13 = arith.constant 0 : index
    %15 = vector.load %arg6[%c0_12, %c0_13] : memref<125x128xf32, #tpu.memory_space<vmem>>, vector<125x128xf32>
    %cst_14 = arith.constant dense<0.000000e+00> : vector<256x128xf32>
    %16 = tpu.matmul %14, %15, %cst_14 {dimension_numbers = #tpu.dot_dimension_numbers<[1], [0], [0], [1], [0, 0, 1, 1], [], []>} : vector<256x125xf32>, vector<125x128xf32>, vector<256x128xf32> -> vector<256x128xf32>
    %c0_15 = arith.constant 0 : index
    %c0_16 = arith.constant 0 : index
    %17 = vector.load %arg7[%c0_15, %c0_16] : memref<3x128xf32, #tpu.memory_space<vmem>>, vector<3x128xf32>
    %cst_17 = arith.constant dense<0.000000e+00> : vector<256x128xf32>
    %18 = tpu.matmul %0, %17, %cst_17 {dimension_numbers = #tpu.dot_dimension_numbers<[1], [0], [0], [1], [0, 0, 1, 1], [], []>} : vector<256x3xf32>, vector<3x128xf32>, vector<256x128xf32> -> vector<256x128xf32>
    %19 = arith.addf %16, %18 : vector<256x128xf32>
    %c0_18 = arith.constant 0 : index
    %c0_19 = arith.constant 0 : index
    %20 = vector.load %arg8[%c0_18, %c0_19] : memref<1x128xf32, #tpu.memory_space<vmem>>, vector<1x128xf32>
    %21 = vector.broadcast %20 : vector<1x128xf32> to vector<256x128xf32>
    %22 = arith.addf %19, %21 : vector<256x128xf32>
    %cst_20 = arith.constant 0.000000e+00 : f32
    %23 = vector.broadcast %cst_20 : f32 to vector<256x128xf32>
    %24 = arith.maximumf %22, %23 : vector<256x128xf32>
    %c0_21 = arith.constant 0 : index
    %c0_22 = arith.constant 0 : index
    %25 = vector.load %arg9[%c0_21, %c0_22] : memref<128x128xf32, #tpu.memory_space<vmem>>, vector<128x128xf32>
    %cst_23 = arith.constant dense<0.000000e+00> : vector<256x128xf32>
    %26 = tpu.matmul %24, %25, %cst_23 {dimension_numbers = #tpu.dot_dimension_numbers<[1], [0], [0], [1], [0, 0, 1, 1], [], []>} : vector<256x128xf32>, vector<128x128xf32>, vector<256x128xf32> -> vector<256x128xf32>
    %c0_24 = arith.constant 0 : index
    %c0_25 = arith.constant 0 : index
    %27 = vector.load %arg10[%c0_24, %c0_25] : memref<1x128xf32, #tpu.memory_space<vmem>>, vector<1x128xf32>
    %28 = vector.broadcast %27 : vector<1x128xf32> to vector<256x128xf32>
    %29 = arith.addf %26, %28 : vector<256x128xf32>
    %cst_26 = arith.constant 0.000000e+00 : f32
    %30 = vector.broadcast %cst_26 : f32 to vector<256x128xf32>
    %31 = arith.maximumf %29, %30 : vector<256x128xf32>
    %c0_27 = arith.constant 0 : index
    %c0_28 = arith.constant 0 : index
    %32 = vector.load %arg11[%c0_27, %c0_28] : memref<128x4xf32, #tpu.memory_space<vmem>>, vector<128x4xf32>
    %cst_29 = arith.constant dense<0.000000e+00> : vector<256x4xf32>
    %33 = tpu.matmul %31, %32, %cst_29 {dimension_numbers = #tpu.dot_dimension_numbers<[1], [0], [0], [1], [0, 0, 1, 1], [], []>} : vector<256x128xf32>, vector<128x4xf32>, vector<256x4xf32> -> vector<256x4xf32>
    %c0_30 = arith.constant 0 : index
    %c0_31 = arith.constant 0 : index
    %34 = vector.load %arg12[%c0_30, %c0_31] : memref<1x4xf32, #tpu.memory_space<vmem>>, vector<1x4xf32>
    %35 = vector.broadcast %34 : vector<1x4xf32> to vector<256x4xf32>
    %36 = arith.addf %33, %35 : vector<256x4xf32>
    %c0_32 = arith.constant 0 : index
    %c0_33 = arith.constant 0 : index
    %37 = vector.load %arg13[%c0_32, %c0_33] : memref<256x4xf32, #tpu.memory_space<vmem>>, vector<256x4xf32>
    tpu.vector_store %arg13[%c0_32, %c0_33], %36 {strides = array<i32>} : memref<256x4xf32, #tpu.memory_space<vmem>>, vector<256x4xf32>,
    return
  }
  func.func @transform_0(%arg0: i32) -> (i32, i32) {
    %c0_i32 = arith.constant 0 : i32
    %c0_i32_0 = arith.constant 0 : i32
    return %arg0, %c0_i32 : i32, i32
  }
  func.func @transform_1(%arg0: i32) -> (i32, i32) {
    %c0_i32 = arith.constant 0 : i32
    %c0_i32_0 = arith.constant 0 : i32
    %c0_i32_1 = arith.constant 0 : i32
    return %c0_i32, %c0_i32_0 : i32, i32
  }
  func.func @transform_2(%arg0: i32) -> (i32, i32) {
    %c0_i32 = arith.constant 0 : i32
    %c0_i32_0 = arith.constant 0 : i32
    %c0_i32_1 = arith.constant 0 : i32
    return %c0_i32, %c0_i32_0 : i32, i32
  }
  func.func @transform_3(%arg0: i32) -> (i32, i32) {
    %c0_i32 = arith.constant 0 : i32
    %c0_i32_0 = arith.constant 0 : i32
    %c0_i32_1 = arith.constant 0 : i32
    return %c0_i32, %c0_i32_0 : i32, i32
  }
  func.func @transform_4(%arg0: i32) -> (i32, i32) {
    %c0_i32 = arith.constant 0 : i32
    %c0_i32_0 = arith.constant 0 : i32
    %c0_i32_1 = arith.constant 0 : i32
    return %c0_i32, %c0_i32_0 : i32, i32
  }
  func.func @transform_5(%arg0: i32) -> (i32, i32) {
    %c0_i32 = arith.constant 0 : i32
    %c0_i32_0 = arith.constant 0 : i32
    %c0_i32_1 = arith.constant 0 : i32
    return %c0_i32, %c0_i32_0 : i32, i32
  }
  func.func @transform_6(%arg0: i32) -> (i32, i32) {
    %c0_i32 = arith.constant 0 : i32
    %c0_i32_0 = arith.constant 0 : i32
    %c0_i32_1 = arith.constant 0 : i32
    return %c0_i32, %c0_i32_0 : i32, i32
  }
  func.func @transform_7(%arg0: i32) -> (i32, i32) {
    %c0_i32 = arith.constant 0 : i32
    %c0_i32_0 = arith.constant 0 : i32
    %c0_i32_1 = arith.constant 0 : i32
    return %c0_i32, %c0_i32_0 : i32, i32
  }
  func.func @transform_8(%arg0: i32) -> (i32, i32) {
    %c0_i32 = arith.constant 0 : i32
    %c0_i32_0 = arith.constant 0 : i32
    %c0_i32_1 = arith.constant 0 : i32
    return %c0_i32, %c0_i32_0 : i32, i32
  }
  func.func @transform_9(%arg0: i32) -> (i32, i32) {
    %c0_i32 = arith.constant 0 : i32
    %c0_i32_0 = arith.constant 0 : i32
    %c0_i32_1 = arith.constant 0 : i32
    return %c0_i32, %c0_i32_0 : i32, i32
  }
  func.func @transform_10(%arg0: i32) -> (i32, i32) {
    %c0_i32 = arith.constant 0 : i32
    %c0_i32_0 = arith.constant 0 : i32
    %c0_i32_1 = arith.constant 0 : i32
    return %c0_i32, %c0_i32_0 : i32, i32
  }
  func.func @transform_11(%arg0: i32) -> (i32, i32) {
    %c0_i32 = arith.constant 0 : i32
    %c0_i32_0 = arith.constant 0 : i32
    %c0_i32_1 = arith.constant 0 : i32
    return %c0_i32, %c0_i32_0 : i32, i32
  }
  func.func @transform_12(%arg0: i32) -> (i32, i32) {
    %c0_i32 = arith.constant 0 : i32
    %c0_i32_0 = arith.constant 0 : i32
    return %arg0, %c0_i32 : i32, i32
  }
}

</mosaic_0001>

<llo_original>
// kernel: tpu_custom_call.1
$region0: #{tpu_custom_call.1}
  #allocation0 [shape = 'u32[]', space=smem, size = 0x4, offset = 0x4, fixed_abs, tag = 'smem constant byte address 0x4 - core index']
  #allocation1 [shape = 'u32[144,128]{1,0:T(1,128)}', space=vmem, size = 0x12000, scoped, tag = 'internal scratch']
  %s0 = inlined_call_operand.vmem [shape: f32[256,3], index: 0, kind: input, shape index: {}]
  %s1 = inlined_call_operand.vmem [shape: f32[3,128], index: 1, kind: input, shape index: {}]
  %s2 = inlined_call_operand.vmem [shape: f32[1,128], index: 2, kind: input, shape index: {}]
  %s3 = inlined_call_operand.vmem [shape: f32[128,125], index: 3, kind: input, shape index: {}]
  %s4 = inlined_call_operand.vmem [shape: f32[1,125], index: 4, kind: input, shape index: {}]
  %s5 = inlined_call_operand.vmem [shape: f32[125,128], index: 5, kind: input, shape index: {}]
  %s6 = inlined_call_operand.vmem [shape: f32[3,128], index: 6, kind: input, shape index: {}]
  %s7 = inlined_call_operand.vmem [shape: f32[1,128], index: 7, kind: input, shape index: {}]
  %s8 = inlined_call_operand.vmem [shape: f32[128,128], index: 8, kind: input, shape index: {}]
  %s9 = inlined_call_operand.vmem [shape: f32[1,128], index: 9, kind: input, shape index: {}]
  %s10 = inlined_call_operand.vmem [shape: f32[128,4], index: 10, kind: input, shape index: {}]
  %s11 = inlined_call_operand.vmem [shape: f32[1,4], index: 11, kind: input, shape index: {}]
  %s12 = inlined_call_operand.vmem [shape: f32[256,4], index: 12, kind: output, shape index: {}]
  %s13 = sld [smem:[#allocation0]]
  $region58: #{tpu_custom_call.1} parent=0
    _
  %s15 = ssub.s32 1, %s13
  %s16 = scalar_select 0, %s15, %s13
  // Predicated region
  $region2: #{tpu_custom_call.1} parent=0 // pred_check
    _
  $region3: #{tpu_custom_call.1} parent=0 // pred_check_branch
    %18 = sbr.rel (0) target = $region5
  $region4: #{tpu_custom_call.1} parent=0 // pred_region
    _
  $region5: #{tpu_custom_call.1} parent=0 // pred_fallthru
    _
  // Predicated region
  $region6: #{tpu_custom_call.1} parent=0 // pred_check
    _
  $region7: #{tpu_custom_call.1} parent=0 // pred_check_branch
    %20 = sbr.rel (0) target = $region9
  $region8: #{tpu_custom_call.1} parent=0 // pred_region
    _
  $region9: #{tpu_custom_call.1} parent=0 // pred_fallthru
    _
  // Predicated region
  $region10: #{tpu_custom_call.1} parent=0 // pred_check
    _
  $region11: #{tpu_custom_call.1} parent=0 // pred_check_branch
    %22 = sbr.rel (0) target = $region13
  $region12: #{tpu_custom_call.1} parent=0 // pred_region
    _
  $region13: #{tpu_custom_call.1} parent=0 // pred_fallthru
    _
  // Predicated region
  $region14: #{tpu_custom_call.1} parent=0 // pred_check
    _
  $region15: #{tpu_custom_call.1} parent=0 // pred_check_branch
    %24 = sbr.rel (0) target = $region17
  $region16: #{tpu_custom_call.1} parent=0 // pred_region
    _
  $region17: #{tpu_custom_call.1} parent=0 // pred_fallthru
    _
  // Predicated region
  $region18: #{tpu_custom_call.1} parent=0 // pred_check
    _
  $region19: #{tpu_custom_call.1} parent=0 // pred_check_branch
    %26 = sbr.rel (0) target = $region21
  $region20: #{tpu_custom_call.1} parent=0 // pred_region
    _
  $region21: #{tpu_custom_call.1} parent=0 // pred_fallthru
    _
  // Predicated region
  $region22: #{tpu_custom_call.1} parent=0 // pred_check
    _
  $region23: #{tpu_custom_call.1} parent=0 // pred_check_branch
    %28 = sbr.rel (0) target = $region25
  $region24: #{tpu_custom_call.1} parent=0 // pred_region
    _
  $region25: #{tpu_custom_call.1} parent=0 // pred_fallthru
    _
  // Predicated region
  $region26: #{tpu_custom_call.1} parent=0 // pred_check
    _
  $region27: #{tpu_custom_call.1} parent=0 // pred_check_branch
    %30 = sbr.rel (0) target = $region29
  $region28: #{tpu_custom_call.1} parent=0 // pred_region
    _
  $region29: #{tpu_custom_call.1} parent=0 // pred_fallthru
    _
  // Predicated region
  $region30: #{tpu_custom_call.1} parent=0 // pred_check
    _
  $region31: #{tpu_custom_call.1} parent=0 // pred_check_branch
    %32 = sbr.rel (0) target = $region33
  $region32: #{tpu_custom_call.1} parent=0 // pred_region
    _
  $region33: #{tpu_custom_call.1} parent=0 // pred_fallthru
    _
  // Predicated region
  $region34: #{tpu_custom_call.1} parent=0 // pred_check
    _
  $region35: #{tpu_custom_call.1} parent=0 // pred_check_branch
    %34 = sbr.rel (0) target = $region37
  $region36: #{tpu_custom_call.1} parent=0 // pred_region
    _
  $region37: #{tpu_custom_call.1} parent=0 // pred_fallthru
    _
  // Predicated region
  $region38: #{tpu_custom_call.1} parent=0 // pred_check
    _
  $region39: #{tpu_custom_call.1} parent=0 // pred_check_branch
    %36 = sbr.rel (0) target = $region41
  $region40: #{tpu_custom_call.1} parent=0 // pred_region
    _
  $region41: #{tpu_custom_call.1} parent=0 // pred_fallthru
    _
  // Predicated region
  $region42: #{tpu_custom_call.1} parent=0 // pred_check
    _
  $region43: #{tpu_custom_call.1} parent=0 // pred_check_branch
    %38 = sbr.rel (0) target = $region45
  $region44: #{tpu_custom_call.1} parent=0 // pred_region
    _
  $region45: #{tpu_custom_call.1} parent=0 // pred_fallthru
    _
  // Predicated region
  $region46: #{tpu_custom_call.1} parent=0 // pred_check
    _
  $region47: #{tpu_custom_call.1} parent=0 // pred_check_branch
    %40 = sbr.rel (0) target = $region49
  $region48: #{tpu_custom_call.1} parent=0 // pred_region
    _
  $region49: #{tpu_custom_call.1} parent=0 // pred_fallthru
    _
  %v41 = vld [vmem:[%s0] sm:$0xff]
  %v42 = vld [vmem:[%s0 + $0x8] sm:$0xff]
  %v43 = vld [vmem:[%s0 + $0x10] sm:$0xff]
  %v44 = vld [vmem:[%s0 + $0x18] sm:$0xff]
  %v45 = vld [vmem:[%s0 + $0x20] sm:$0xff]
  %v46 = vld [vmem:[%s0 + $0x28] sm:$0xff]
  %v47 = vld [vmem:[%s0 + $0x30] sm:$0xff]
  %v48 = vld [vmem:[%s0 + $0x38] sm:$0xff]
  %v49 = vld [vmem:[%s0 + $0x40] sm:$0xff]
  %v50 = vld [vmem:[%s0 + $0x48] sm:$0xff]
  %v51 = vld [vmem:[%s0 + $0x50] sm:$0xff]
  %v52 = vld [vmem:[%s0 + $0x58] sm:$0xff]
  %v53 = vld [vmem:[%s0 + $0x60] sm:$0xff]
  %v54 = vld [vmem:[%s0 + $0x68] sm:$0xff]
  %v55 = vld [vmem:[%s0 + $0x70] sm:$0xff]
  %v56 = vld [vmem:[%s0 + $0x78] sm:$0xff]
  %v57 = vld [vmem:[%s0 + $0x80] sm:$0xff]
  %v58 = vld [vmem:[%s0 + $0x88] sm:$0xff]
  %v59 = vld [vmem:[%s0 + $0x90] sm:$0xff]
  %v60 = vld [vmem:[%s0 + $0x98] sm:$0xff]
  %v61 = vld [vmem:[%s0 + $0xa0] sm:$0xff]
  %v62 = vld [vmem:[%s0 + $0xa8] sm:$0xff]
  %v63 = vld [vmem:[%s0 + $0xb0] sm:$0xff]
  %v64 = vld [vmem:[%s0 + $0xb8] sm:$0xff]
  %v65 = vld [vmem:[%s0 + $0xc0] sm:$0xff]
  %v66 = vld [vmem:[%s0 + $0xc8] sm:$0xff]
  %v67 = vld [vmem:[%s0 + $0xd0] sm:$0xff]
  %v68 = vld [vmem:[%s0 + $0xd8] sm:$0xff]
  %v69 = vld [vmem:[%s0 + $0xe0] sm:$0xff]
  %v70 = vld [vmem:[%s0 + $0xe8] sm:$0xff]
  %v71 = vld [vmem:[%s0 + $0xf0] sm:$0xff]
  %v72 = vld [vmem:[%s0 + $0xf8] sm:$0xff]
  %v73 = vld [vmem:[%s1] sm:$0x7]
  %v74 = vld [vmem:[%s2] sm:$0x1]
  %v76 = vlaneseq
  %v77 = vshrl.u32 %v76, 7
  %v78 = vsub.s32 0, %v77
  %v79 = vrot.slane %v74, %v78
  %vm81 = vcmask 23552
  %v83 = vsel %vm81, %v41, 0
  %v86 = vsel %vm81, %v42, 0
  %v89 = vsel %vm81, %v43, 0
  %v92 = vsel %vm81, %v44, 0
  %v95 = vsel %vm81, %v45, 0
  %v98 = vsel %vm81, %v46, 0
  %v101 = vsel %vm81, %v47, 0
  %v104 = vsel %vm81, %v48, 0
  %v107 = vsel %vm81, %v49, 0
  %v110 = vsel %vm81, %v50, 0
  %v113 = vsel %vm81, %v51, 0
  %v116 = vsel %vm81, %v52, 0
  %v119 = vsel %vm81, %v53, 0
  %v122 = vsel %vm81, %v54, 0
  %v125 = vsel %vm81, %v55, 0
  %v128 = vsel %vm81, %v56, 0
  %v131 = vsel %vm81, %v57, 0
  %v134 = vsel %vm81, %v58, 0
  %v137 = vsel %vm81, %v59, 0
  %v140 = vsel %vm81, %v60, 0
  %v143 = vsel %vm81, %v61, 0
  %v146 = vsel %vm81, %v62, 0
  %v149 = vsel %vm81, %v63, 0
  %v152 = vsel %vm81, %v64, 0
  %v155 = vsel %vm81, %v65, 0
  %v158 = vsel %vm81, %v66, 0
  %v161 = vsel %vm81, %v67, 0
  %v164 = vsel %vm81, %v68, 0
  %v167 = vsel %vm81, %v69, 0
  %v170 = vsel %vm81, %v70, 0
  %v173 = vsel %vm81, %v71, 0
  %v176 = vsel %vm81, %v72, 0
  %vm178 = vcmask 1042432
  %v180 = vsel %vm178, %v73, 0
  %182 = vmatprep.subr.mxu0 0.0
  %183 = vmatpush1.msra.mxu0 %v180
  %184 = vmatprep.subr.mxu0 0.0
  %185 = vmatpush1.msra.mxu0 0.0
  %186 = vmatprep.subr.mxu0 0.0
  %187 = vmatpush1.msra.mxu0 0.0
  %188 = vmatprep.subr.mxu0 0.0
  %189 = vmatpush1.msra.mxu0 0.0
  %190 = vmatprep.subr.mxu0 0.0
  %191 = vmatpush1.msra.mxu0 0.0
  %192 = vmatprep.subr.mxu0 0.0
  %193 = vmatpush1.msra.mxu0 0.0
  %194 = vmatprep.subr.mxu0 0.0
  %195 = vmatpush1.msra.mxu0 0.0
  %196 = vmatprep.subr.mxu0 0.0
  %197 = vmatpush1.msra.mxu0 0.0
  %198 = vmatprep.subr.mxu0 0.0
  %199 = vmatpush1.msra.mxu0 0.0
  %200 = vmatprep.subr.mxu0 0.0
  %201 = vmatpush1.msra.mxu0 0.0
  %202 = vmatprep.subr.mxu0 0.0
  %203 = vmatpush1.msra.mxu0 0.0
  %204 = vmatprep.subr.mxu0 0.0
  %205 = vmatpush1.msra.mxu0 0.0
  %206 = vmatprep.subr.mxu0 0.0
  %207 = vmatpush1.msra.mxu0 0.0
  %208 = vmatprep.subr.mxu0 0.0
  %209 = vmatpush1.msra.mxu0 0.0
  %210 = vmatprep.subr.mxu0 0.0
  %211 = vmatpush1.msra.mxu0 0.0
  %212 = vmatprep.subr.mxu0 0.0
  %213 = vmatpush1.msra.mxu0 0.0
  %214 = vmatprep.subr.mxu0 0.0
  %215 = vmatpush1.msra.mxu0 0.0
  %216 = vmatprep.subr.mxu0 0.0
  %217 = vmatpush1.msra.mxu0 0.0
  %218 = vmatprep.subr.mxu0 0.0
  %219 = vmatpush1.msra.mxu0 0.0
  %220 = vmatprep.subr.mxu0 0.0
  %221 = vmatpush1.msra.mxu0 0.0
  %222 = vmatprep.subr.mxu0 0.0
  %223 = vmatpush1.msra.mxu0 0.0
  %224 = vmatprep.subr.mxu0 0.0
  %225 = vmatpush1.msra.mxu0 0.0
  %226 = vmatprep.subr.mxu0 0.0
  %227 = vmatpush1.msra.mxu0 0.0
  %228 = vmatprep.subr.mxu0 0.0
  %229 = vmatpush1.msra.mxu0 0.0
  %230 = vmatprep.subr.mxu0 0.0
  %231 = vmatpush1.msra.mxu0 0.0
  %232 = vmatprep.subr.mxu0 0.0
  %233 = vmatpush1.msra.mxu0 0.0
  %234 = vmatprep.subr.mxu0 0.0
  %235 = vmatpush1.msra.mxu0 0.0
  %236 = vmatprep.subr.mxu0 0.0
  %237 = vmatpush1.msra.mxu0 0.0
  %238 = vmatprep.subr.mxu0 0.0
  %239 = vmatpush1.msra.mxu0 0.0
  %240 = vmatprep.subr.mxu0 0.0
  %241 = vmatpush1.msra.mxu0 0.0
  %242 = vmatprep.subr.mxu0 0.0
  %243 = vmatpush1.msra.mxu0 0.0
  %244 = vmatprep.subr.mxu0 0.0
  %245 = vmatpush1.msra.mxu0 0.0
  %246 = vmatprep.mubr.f32.mxu0 0.0
  %247 = vmatmul.mubr.f32.gmra.mrb[0].mxu0 %v83
  %v248 = vpop.f32.mrb[0].mxu0
  %v249 = vadd.f32 %v79, %v248
  %v250 = vpop.f32.mrb[0].mxu0
  %251 = vmatprep.mubr.f32.mxu0 0.0
  %252 = vmatmul.mubr.f32.gmra.mrb[0].mxu0 %v86
  %v253 = vpop.f32.mrb[0].mxu0
  %v254 = vadd.f32 %v79, %v253
  %v255 = vpop.f32.mrb[0].mxu0
  %256 = vmatprep.mubr.f32.mxu0 0.0
  %257 = vmatmul.mubr.f32.gmra.mrb[0].mxu0 %v89
  %v258 = vpop.f32.mrb[0].mxu0
  %v259 = vadd.f32 %v79, %v258
  %v260 = vpop.f32.mrb[0].mxu0
  %261 = vmatprep.mubr.f32.mxu0 0.0
  %262 = vmatmul.mubr.f32.gmra.mrb[0].mxu0 %v92
  %v263 = vpop.f32.mrb[0].mxu0
  %v264 = vadd.f32 %v79, %v263
  %v265 = vpop.f32.mrb[0].mxu0
  %266 = vmatprep.mubr.f32.mxu0 0.0
  %267 = vmatmul.mubr.f32.gmra.mrb[0].mxu0 %v95
  %v268 = vpop.f32.mrb[0].mxu0
  %v269 = vadd.f32 %v79, %v268
  %v270 = vpop.f32.mrb[0].mxu0
  %271 = vmatprep.mubr.f32.mxu0 0.0
  %272 = vmatmul.mubr.f32.gmra.mrb[0].mxu0 %v98
  %v273 = vpop.f32.mrb[0].mxu0
  %v274 = vadd.f32 %v79, %v273
  %v275 = vpop.f32.mrb[0].mxu0
  %276 = vmatprep.mubr.f32.mxu0 0.0
  %277 = vmatmul.mubr.f32.gmra.mrb[0].mxu0 %v101
  %v278 = vpop.f32.mrb[0].mxu0
  %v279 = vadd.f32 %v79, %v278
  %v280 = vpop.f32.mrb[0].mxu0
  %281 = vmatprep.mubr.f32.mxu0 0.0
  %282 = vmatmul.mubr.f32.gmra.mrb[0].mxu0 %v104
  %v283 = vpop.f32.mrb[0].mxu0
  %v284 = vadd.f32 %v79, %v283
  %v285 = vpop.f32.mrb[0].mxu0
  %286 = vmatprep.mubr.f32.mxu0 0.0
  %287 = vmatmul.mubr.f32.gmra.mrb[0].mxu0 %v107
  %v288 = vpop.f32.mrb[0].mxu0
  %v289 = vadd.f32 %v79, %v288
  %v290 = vpop.f32.mrb[0].mxu0
  %291 = vmatprep.mubr.f32.mxu0 0.0
  %292 = vmatmul.mubr.f32.gmra.mrb[0].mxu0 %v110
  %v293 = vpop.f32.mrb[0].mxu0
  %v294 = vadd.f32 %v79, %v293
  %v295 = vpop.f32.mrb[0].mxu0
  %296 = vmatprep.mubr.f32.mxu0 0.0
  %297 = vmatmul.mubr.f32.gmra.mrb[0].mxu0 %v113
  %v298 = vpop.f32.mrb[0].mxu0
  %v299 = vadd.f32 %v79, %v298
  %v300 = vpop.f32.mrb[0].mxu0
  %301 = vmatprep.mubr.f32.mxu0 0.0
  %302 = vmatmul.mubr.f32.gmra.mrb[0].mxu0 %v116
  %v303 = vpop.f32.mrb[0].mxu0
  %v304 = vadd.f32 %v79, %v303
  %v305 = vpop.f32.mrb[0].mxu0
  %306 = vmatprep.mubr.f32.mxu0 0.0
  %307 = vmatmul.mubr.f32.gmra.mrb[0].mxu0 %v119
  %v308 = vpop.f32.mrb[0].mxu0
  %v309 = vadd.f32 %v79, %v308
  %v310 = vpop.f32.mrb[0].mxu0
  %311 = vmatprep.mubr.f32.mxu0 0.0
  %312 = vmatmul.mubr.f32.gmra.mrb[0].mxu0 %v122
  %v313 = vpop.f32.mrb[0].mxu0
  %v314 = vadd.f32 %v79, %v313
  %v315 = vpop.f32.mrb[0].mxu0
  %316 = vmatprep.mubr.f32.mxu0 0.0
  %317 = vmatmul.mubr.f32.gmra.mrb[0].mxu0 %v125
  %v318 = vpop.f32.mrb[0].mxu0
  %v319 = vadd.f32 %v79, %v318
  %v320 = vpop.f32.mrb[0].mxu0
  %321 = vmatprep.mubr.f32.mxu0 0.0
  %322 = vmatmul.mubr.f32.gmra.mrb[0].mxu0 %v128
  %v323 = vpop.f32.mrb[0].mxu0
  %v324 = vadd.f32 %v79, %v323
  %v325 = vpop.f32.mrb[0].mxu0
  %326 = vmatprep.mubr.f32.mxu0 0.0
  %327 = vmatmul.mubr.f32.gmra.mrb[0].mxu0 %v131
  %v328 = vpop.f32.mrb[0].mxu0
  %v329 = vadd.f32 %v79, %v328
  %v330 = vpop.f32.mrb[0].mxu0
  %331 = vmatprep.mubr.f32.mxu0 0.0
  %332 = vmatmul.mubr.f32.gmra.mrb[0].mxu0 %v134
  %v333 = vpop.f32.mrb[0].mxu0
  %v334 = vadd.f32 %v79, %v333
  %v335 = vpop.f32.mrb[0].mxu0
  %336 = vmatprep.mubr.f32.mxu0 0.0
  %337 = vmatmul.mubr.f32.gmra.mrb[0].mxu0 %v137
  %v338 = vpop.f32.mrb[0].mxu0
  %v339 = vadd.f32 %v79, %v338
  %v340 = vpop.f32.mrb[0].mxu0
  %341 = vmatprep.mubr.f32.mxu0 0.0
  %342 = vmatmul.mubr.f32.gmra.mrb[0].mxu0 %v140
  %v343 = vpop.f32.mrb[0].mxu0
  %v344 = vadd.f32 %v79, %v343
  %v345 = vpop.f32.mrb[0].mxu0
  %346 = vmatprep.mubr.f32.mxu0 0.0
  %347 = vmatmul.mubr.f32.gmra.mrb[0].mxu0 %v143
  %v348 = vpop.f32.mrb[0].mxu0
  %v349 = vadd.f32 %v79, %v348
  %v350 = vpop.f32.mrb[0].mxu0
  %351 = vmatprep.mubr.f32.mxu0 0.0
  %352 = vmatmul.mubr.f32.gmra.mrb[0].mxu0 %v146
  %v353 = vpop.f32.mrb[0].mxu0
  %v354 = vadd.f32 %v79, %v353
  %v355 = vpop.f32.mrb[0].mxu0
  %356 = vmatprep.mubr.f32.mxu0 0.0
  %357 = vmatmul.mubr.f32.gmra.mrb[0].mxu0 %v149
  %v358 = vpop.f32.mrb[0].mxu0
  %v359 = vadd.f32 %v79, %v358
  %v360 = vpop.f32.mrb[0].mxu0
  %361 = vmatprep.mubr.f32.mxu0 0.0
  %362 = vmatmul.mubr.f32.gmra.mrb[0].mxu0 %v152
  %v363 = vpop.f32.mrb[0].mxu0
  %v364 = vadd.f32 %v79, %v363
  %v365 = vpop.f32.mrb[0].mxu0
  %366 = vmatprep.mubr.f32.mxu0 0.0
  %367 = vmatmul.mubr.f32.gmra.mrb[0].mxu0 %v155
  %v368 = vpop.f32.mrb[0].mxu0
  %v369 = vadd.f32 %v79, %v368
  %v370 = vpop.f32.mrb[0].mxu0
  %371 = vmatprep.mubr.f32.mxu0 0.0
  %372 = vmatmul.mubr.f32.gmra.mrb[0].mxu0 %v158
  %v373 = vpop.f32.mrb[0].mxu0
  %v374 = vadd.f32 %v79, %v373
  %v375 = vpop.f32.mrb[0].mxu0
  %376 = vmatprep.mubr.f32.mxu0 0.0
  %377 = vmatmul.mubr.f32.gmra.mrb[0].mxu0 %v161
  %v378 = vpop.f32.mrb[0].mxu0
  %v379 = vadd.f32 %v79, %v378
  %v380 = vpop.f32.mrb[0].mxu0
  %381 = vmatprep.mubr.f32.mxu0 0.0
  %382 = vmatmul.mubr.f32.gmra.mrb[0].mxu0 %v164
  %v383 = vpop.f32.mrb[0].mxu0
  %v384 = vadd.f32 %v79, %v383
  %v385 = vpop.f32.mrb[0].mxu0
  %386 = vmatprep.mubr.f32.mxu0 0.0
  %387 = vmatmul.mubr.f32.gmra.mrb[0].mxu0 %v167
  %v388 = vpop.f32.mrb[0].mxu0
  %v389 = vadd.f32 %v79, %v388
  %v390 = vpop.f32.mrb[0].mxu0
  %391 = vmatprep.mubr.f32.mxu0 0.0
  %392 = vmatmul.mubr.f32.gmra.mrb[0].mxu0 %v170
  %v393 = vpop.f32.mrb[0].mxu0
  %v394 = vadd.f32 %v79, %v393
  %v395 = vpop.f32.mrb[0].mxu0
  %396 = vmatprep.mubr.f32.mxu0 0.0
  %397 = vmatmul.mubr.f32.gmra.mrb[0].mxu0 %v173
  %v398 = vpop.f32.mrb[0].mxu0
  %v399 = vadd.f32 %v79, %v398
  %v400 = vpop.f32.mrb[0].mxu0
  %401 = vmatprep.mubr.f32.mxu0 0.0
  %402 = vmatmul.mubr.f32.gmra.mrb[0].mxu0 %v176
  %v403 = vpop.f32.mrb[0].mxu0
  %v404 = vadd.f32 %v79, %v403
  %v405 = vpop.f32.mrb[0].mxu0
  %406 = vdwg.mxu0
  %v407 = vmax.f32 %v249, 0.0
  %v408 = vmax.f32 %v254, 0.0
  %v409 = vmax.f32 %v259, 0.0
  %v410 = vmax.f32 %v264, 0.0
  %v411 = vmax.f32 %v269, 0.0
  %v412 = vmax.f32 %v274, 0.0
  %v413 = vmax.f32 %v279, 0.0
  %v414 = vmax.f32 %v284, 0.0
  %v415 = vmax.f32 %v289, 0.0
  %v416 = vmax.f32 %v294, 0.0
  %v417 = vmax.f32 %v299, 0.0
  %v418 = vmax.f32 %v304, 0.0
  %v419 = vmax.f32 %v309, 0.0
  %v420 = vmax.f32 %v314, 0.0
  %v421 = vmax.f32 %v319, 0.0
  %v422 = vmax.f32 %v324, 0.0
  %v423 = vmax.f32 %v329, 0.0
  %v424 = vmax.f32 %v334, 0.0
  %v425 = vmax.f32 %v339, 0.0
  %v426 = vmax.f32 %v344, 0.0
  %v427 = vmax.f32 %v349, 0.0
  %v428 = vmax.f32 %v354, 0.0
  %v429 = vmax.f32 %v359, 0.0
  %v430 = vmax.f32 %v364, 0.0
  %v431 = vmax.f32 %v369, 0.0
  %v432 = vmax.f32 %v374, 0.0
  %v433 = vmax.f32 %v379, 0.0
  %v434 = vmax.f32 %v384, 0.0
  %v435 = vmax.f32 %v389, 0.0
  %v436 = vmax.f32 %v394, 0.0
  %v437 = vmax.f32 %v399, 0.0
  %v438 = vmax.f32 %v404, 0.0
  %v439 = vld [vmem:[%s3] sm:$0xff]
  %v440 = vld [vmem:[%s3 + $0x8] sm:$0xff]
  %v441 = vld [vmem:[%s3 + $0x10] sm:$0xff]
  %v442 = vld [vmem:[%s3 + $0x18] sm:$0xff]
  %v443 = vld [vmem:[%s3 + $0x20] sm:$0xff]
  %v444 = vld [vmem:[%s3 + $0x28] sm:$0xff]
  %v445 = vld [vmem:[%s3 + $0x30] sm:$0xff]
  %v446 = vld [vmem:[%s3 + $0x38] sm:$0xff]
  %v447 = vld [vmem:[%s3 + $0x40] sm:$0xff]
  %v448 = vld [vmem:[%s3 + $0x48] sm:$0xff]
  %v449 = vld [vmem:[%s3 + $0x50] sm:$0xff]
  %v450 = vld [vmem:[%s3 + $0x58] sm:$0xff]
  %v451 = vld [vmem:[%s3 + $0x60] sm:$0xff]
  %v452 = vld [vmem:[%s3 + $0x68] sm:$0xff]
  %v453 = vld [vmem:[%s3 + $0x70] sm:$0xff]
  %v454 = vld [vmem:[%s3 + $0x78] sm:$0xff]
  %v455 = vld [vmem:[%s4] sm:$0x1]
  %v457 = vlaneseq
  %v458 = vshrl.u32 %v457, 7
  %v459 = vsub.s32 0, %v458
  %v460 = vrot.slane %v455, %v459
  %462 = vmatprep.subr.mxu0 0.0
  %463 = vmatpush1.msra.mxu0 %v439
  %464 = vmatprep.subr.mxu0 0.0
  %465 = vmatpush1.msra.mxu0 %v440
  %466 = vmatprep.subr.mxu0 0.0
  %467 = vmatpush1.msra.mxu0 %v441
  %468 = vmatprep.subr.mxu0 0.0
  %469 = vmatpush1.msra.mxu0 %v442
  %470 = vmatprep.subr.mxu0 0.0
  %471 = vmatpush1.msra.mxu0 %v443
  %472 = vmatprep.subr.mxu0 0.0
  %473 = vmatpush1.msra.mxu0 %v444
  %474 = vmatprep.subr.mxu0 0.0
  %475 = vmatpush1.msra.mxu0 %v445
  %476 = vmatprep.subr.mxu0 0.0
  %477 = vmatpush1.msra.mxu0 %v446
  %478 = vmatprep.subr.mxu0 0.0
  %479 = vmatpush1.msra.mxu0 %v447
  %480 = vmatprep.subr.mxu0 0.0
  %481 = vmatpush1.msra.mxu0 %v448
  %482 = vmatprep.subr.mxu0 0.0
  %483 = vmatpush1.msra.mxu0 %v449
  %484 = vmatprep.subr.mxu0 0.0
  %485 = vmatpush1.msra.mxu0 %v450
  %486 = vmatprep.subr.mxu0 0.0
  %487 = vmatpush1.msra.mxu0 %v451
  %488 = vmatprep.subr.mxu0 0.0
  %489 = vmatpush1.msra.mxu0 %v452
  %490 = vmatprep.subr.mxu0 0.0
  %491 = vmatpush1.msra.mxu0 %v453
  %492 = vmatprep.subr.mxu0 0.0
  %493 = vmatpush1.msra.mxu0 %v454
  %494 = vmatprep.subr.mxu0 0.0
  %495 = vmatpush1.msra.mxu0 0.0
  %496 = vmatprep.subr.mxu0 0.0
  %497 = vmatpush1.msra.mxu0 0.0
  %498 = vmatprep.subr.mxu0 0.0
  %499 = vmatpush1.msra.mxu0 0.0
  %500 = vmatprep.subr.mxu0 0.0
  %501 = vmatpush1.msra.mxu0 0.0
  %502 = vmatprep.subr.mxu0 0.0
  %503 = vmatpush1.msra.mxu0 0.0
  %504 = vmatprep.subr.mxu0 0.0
  %505 = vmatpush1.msra.mxu0 0.0
  %506 = vmatprep.subr.mxu0 0.0
  %507 = vmatpush1.msra.mxu0 0.0
  %508 = vmatprep.subr.mxu0 0.0
  %509 = vmatpush1.msra.mxu0 0.0
  %510 = vmatprep.subr.mxu0 0.0
  %511 = vmatpush1.msra.mxu0 0.0
  %512 = vmatprep.subr.mxu0 0.0
  %513 = vmatpush1.msra.mxu0 0.0
  %514 = vmatprep.subr.mxu0 0.0
  %515 = vmatpush1.msra.mxu0 0.0
  %516 = vmatprep.subr.mxu0 0.0
  %517 = vmatpush1.msra.mxu0 0.0
  %518 = vmatprep.subr.mxu0 0.0
  %519 = vmatpush1.msra.mxu0 0.0
  %520 = vmatprep.subr.mxu0 0.0
  %521 = vmatpush1.msra.mxu0 0.0
  %522 = vmatprep.subr.mxu0 0.0
  %523 = vmatpush1.msra.mxu0 0.0
  %524 = vmatprep.subr.mxu0 0.0
  %525 = vmatpush1.msra.mxu0 0.0
  %526 = vmatprep.mubr.f32.mxu0 0.0
  %527 = vmatmul.mubr.f32.gmra.mrb[0].mxu0 %v407
  %v528 = vpop.f32.mrb[0].mxu0
  %v529 = vadd.f32 %v460, %v528
  %v530 = vpop.f32.mrb[0].mxu0
  %531 = vmatprep.mubr.f32.mxu0 0.0
  %532 = vmatmul.mubr.f32.gmra.mrb[0].mxu0 %v408
  %v533 = vpop.f32.mrb[0].mxu0
  %v534 = vadd.f32 %v460, %v533
  %v535 = vpop.f32.mrb[0].mxu0
  %536 = vmatprep.mubr.f32.mxu0 0.0
  %537 = vmatmul.mubr.f32.gmra.mrb[0].mxu0 %v409
  %v538 = vpop.f32.mrb[0].mxu0
  %v539 = vadd.f32 %v460, %v538
  %v540 = vpop.f32.mrb[0].mxu0
  %541 = vmatprep.mubr.f32.mxu0 0.0
  %542 = vmatmul.mubr.f32.gmra.mrb[0].mxu0 %v410
  %v543 = vpop.f32.mrb[0].mxu0
  %v544 = vadd.f32 %v460, %v543
  %v545 = vpop.f32.mrb[0].mxu0
  %546 = vmatprep.mubr.f32.mxu0 0.0
  %547 = vmatmul.mubr.f32.gmra.mrb[0].mxu0 %v411
  %v548 = vpop.f32.mrb[0].mxu0
  %v549 = vadd.f32 %v460, %v548
  %v550 = vpop.f32.mrb[0].mxu0
  %551 = vmatprep.mubr.f32.mxu0 0.0
  %552 = vmatmul.mubr.f32.gmra.mrb[0].mxu0 %v412
  %v553 = vpop.f32.mrb[0].mxu0
  %v554 = vadd.f32 %v460, %v553
  %v555 = vpop.f32.mrb[0].mxu0
  %556 = vmatprep.mubr.f32.mxu0 0.0
  %557 = vmatmul.mubr.f32.gmra.mrb[0].mxu0 %v413
  %v558 = vpop.f32.mrb[0].mxu0
  %v559 = vadd.f32 %v460, %v558
  %v560 = vpop.f32.mrb[0].mxu0
  %561 = vmatprep.mubr.f32.mxu0 0.0
  %562 = vmatmul.mubr.f32.gmra.mrb[0].mxu0 %v414
  %v563 = vpop.f32.mrb[0].mxu0
  %v564 = vadd.f32 %v460, %v563
  %v565 = vpop.f32.mrb[0].mxu0
  %566 = vmatprep.mubr.f32.mxu0 0.0
  %567 = vmatmul.mubr.f32.gmra.mrb[0].mxu0 %v415
  %v568 = vpop.f32.mrb[0].mxu0
  %v569 = vadd.f32 %v460, %v568
  %v570 = vpop.f32.mrb[0].mxu0
  %571 = vmatprep.mubr.f32.mxu0 0.0
  %572 = vmatmul.mubr.f32.gmra.mrb[0].mxu0 %v416
  %v573 = vpop.f32.mrb[0].mxu0
  %v574 = vadd.f32 %v460, %v573
  %v575 = vpop.f32.mrb[0].mxu0
  %576 = vmatprep.mubr.f32.mxu0 0.0
  %577 = vmatmul.mubr.f32.gmra.mrb[0].mxu0 %v417
  %v578 = vpop.f32.mrb[0].mxu0
  %v579 = vadd.f32 %v460, %v578
  %v580 = vpop.f32.mrb[0].mxu0
  %581 = vmatprep.mubr.f32.mxu0 0.0
  %582 = vmatmul.mubr.f32.gmra.mrb[0].mxu0 %v418
  %v583 = vpop.f32.mrb[0].mxu0
  %v584 = vadd.f32 %v460, %v583
  %v585 = vpop.f32.mrb[0].mxu0
  %586 = vmatprep.mubr.f32.mxu0 0.0
  %587 = vmatmul.mubr.f32.gmra.mrb[0].mxu0 %v419
  %v588 = vpop.f32.mrb[0].mxu0
  %v589 = vadd.f32 %v460, %v588
  %v590 = vpop.f32.mrb[0].mxu0
  %591 = vmatprep.mubr.f32.mxu0 0.0
  %592 = vmatmul.mubr.f32.gmra.mrb[0].mxu0 %v420
  %v593 = vpop.f32.mrb[0].mxu0
  %v594 = vadd.f32 %v460, %v593
  %v595 = vpop.f32.mrb[0].mxu0
  %596 = vmatprep.mubr.f32.mxu0 0.0
  %597 = vmatmul.mubr.f32.gmra.mrb[0].mxu0 %v421
  %v598 = vpop.f32.mrb[0].mxu0
  %v599 = vadd.f32 %v460, %v598
  %v600 = vpop.f32.mrb[0].mxu0
  %601 = vmatprep.mubr.f32.mxu0 0.0
  %602 = vmatmul.mubr.f32.gmra.mrb[0].mxu0 %v422
  %v603 = vpop.f32.mrb[0].mxu0
  %v604 = vadd.f32 %v460, %v603
  %v605 = vpop.f32.mrb[0].mxu0
  %606 = vmatprep.mubr.f32.mxu0 0.0
  %607 = vmatmul.mubr.f32.gmra.mrb[0].mxu0 %v423
  %v608 = vpop.f32.mrb[0].mxu0
  %v609 = vadd.f32 %v460, %v608
  %v610 = vpop.f32.mrb[0].mxu0
  %611 = vmatprep.mubr.f32.mxu0 0.0
  %612 = vmatmul.mubr.f32.gmra.mrb[0].mxu0 %v424
  %v613 = vpop.f32.mrb[0].mxu0
  %v614 = vadd.f32 %v460, %v613
  %v615 = vpop.f32.mrb[0].mxu0
  %616 = vmatprep.mubr.f32.mxu0 0.0
  %617 = vmatmul.mubr.f32.gmra.mrb[0].mxu0 %v425
  %v618 = vpop.f32.mrb[0].mxu0
  %v619 = vadd.f32 %v460, %v618
  %v620 = vpop.f32.mrb[0].mxu0
  %621 = vmatprep.mubr.f32.mxu0 0.0
  %622 = vmatmul.mubr.f32.gmra.mrb[0].mxu0 %v426
  %v623 = vpop.f32.mrb[0].mxu0
  %v624 = vadd.f32 %v460, %v623
  %v625 = vpop.f32.mrb[0].mxu0
  %626 = vmatprep.mubr.f32.mxu0 0.0
  %627 = vmatmul.mubr.f32.gmra.mrb[0].mxu0 %v427
  %v628 = vpop.f32.mrb[0].mxu0
  %v629 = vadd.f32 %v460, %v628
  %v630 = vpop.f32.mrb[0].mxu0
  %631 = vmatprep.mubr.f32.mxu0 0.0
  %632 = vmatmul.mubr.f32.gmra.mrb[0].mxu0 %v428
  %v633 = vpop.f32.mrb[0].mxu0
  %v634 = vadd.f32 %v460, %v633
  %v635 = vpop.f32.mrb[0].mxu0
  %636 = vmatprep.mubr.f32.mxu0 0.0
  %637 = vmatmul.mubr.f32.gmra.mrb[0].mxu0 %v429
  %v638 = vpop.f32.mrb[0].mxu0
  %v639 = vadd.f32 %v460, %v638
  %v640 = vpop.f32.mrb[0].mxu0
  %641 = vmatprep.mubr.f32.mxu0 0.0
  %642 = vmatmul.mubr.f32.gmra.mrb[0].mxu0 %v430
  %v643 = vpop.f32.mrb[0].mxu0
  %v644 = vadd.f32 %v460, %v643
  %v645 = vpop.f32.mrb[0].mxu0
  %646 = vmatprep.mubr.f32.mxu0 0.0
  %647 = vmatmul.mubr.f32.gmra.mrb[0].mxu0 %v431
  %v648 = vpop.f32.mrb[0].mxu0
  %v649 = vadd.f32 %v460, %v648
  %v650 = vpop.f32.mrb[0].mxu0
  %651 = vmatprep.mubr.f32.mxu0 0.0
  %652 = vmatmul.mubr.f32.gmra.mrb[0].mxu0 %v432
  %v653 = vpop.f32.mrb[0].mxu0
  %v654 = vadd.f32 %v460, %v653
  %v655 = vpop.f32.mrb[0].mxu0
  %656 = vmatprep.mubr.f32.mxu0 0.0
  %657 = vmatmul.mubr.f32.gmra.mrb[0].mxu0 %v433
  %v658 = vpop.f32.mrb[0].mxu0
  %v659 = vadd.f32 %v460, %v658
  %v660 = vpop.f32.mrb[0].mxu0
  %661 = vmatprep.mubr.f32.mxu0 0.0
  %662 = vmatmul.mubr.f32.gmra.mrb[0].mxu0 %v434
  %v663 = vpop.f32.mrb[0].mxu0
  %v664 = vadd.f32 %v460, %v663
  %v665 = vpop.f32.mrb[0].mxu0
  %666 = vmatprep.mubr.f32.mxu0 0.0
  %667 = vmatmul.mubr.f32.gmra.mrb[0].mxu0 %v435
  %v668 = vpop.f32.mrb[0].mxu0
  %v669 = vadd.f32 %v460, %v668
  %v670 = vpop.f32.mrb[0].mxu0
  %671 = vmatprep.mubr.f32.mxu0 0.0
  %672 = vmatmul.mubr.f32.gmra.mrb[0].mxu0 %v436
  %v673 = vpop.f32.mrb[0].mxu0
  %v674 = vadd.f32 %v460, %v673
  %v675 = vpop.f32.mrb[0].mxu0
  %676 = vmatprep.mubr.f32.mxu0 0.0
  %677 = vmatmul.mubr.f32.gmra.mrb[0].mxu0 %v437
  %v678 = vpop.f32.mrb[0].mxu0
  %v679 = vadd.f32 %v460, %v678
  %v680 = vpop.f32.mrb[0].mxu0
  %681 = vmatprep.mubr.f32.mxu0 0.0
  %682 = vmatmul.mubr.f32.gmra.mrb[0].mxu0 %v438
  %v683 = vpop.f32.mrb[0].mxu0
  %v684 = vadd.f32 %v460, %v683
  %v685 = vpop.f32.mrb[0].mxu0
  %686 = vdwg.mxu0
  %v687 = vmax.f32 %v529, 0.0
  %v688 = vmax.f32 %v534, 0.0
  %v689 = vmax.f32 %v539, 0.0
  %v690 = vmax.f32 %v544, 0.0
  %v691 = vmax.f32 %v549, 0.0
  %v692 = vmax.f32 %v554, 0.0
  %v693 = vmax.f32 %v559, 0.0
  %v694 = vmax.f32 %v564, 0.0
  %v695 = vmax.f32 %v569, 0.0
  %v696 = vmax.f32 %v574, 0.0
  %v697 = vmax.f32 %v579, 0.0
  %v698 = vmax.f32 %v584, 0.0
  %v699 = vmax.f32 %v589, 0.0
  %v700 = vmax.f32 %v594, 0.0
  %v701 = vmax.f32 %v599, 0.0
  %v702 = vmax.f32 %v604, 0.0
  %v703 = vmax.f32 %v609, 0.0
  %v704 = vmax.f32 %v614, 0.0
  %v705 = vmax.f32 %v619, 0.0
  %v706 = vmax.f32 %v624, 0.0
  %v707 = vmax.f32 %v629, 0.0
  %v708 = vmax.f32 %v634, 0.0
  %v709 = vmax.f32 %v639, 0.0
  %v710 = vmax.f32 %v644, 0.0
  %v711 = vmax.f32 %v649, 0.0
  %v712 = vmax.f32 %v654, 0.0
  %v713 = vmax.f32 %v659, 0.0
  %v714 = vmax.f32 %v664, 0.0
  %v715 = vmax.f32 %v669, 0.0
  %v716 = vmax.f32 %v674, 0.0
  %v717 = vmax.f32 %v679, 0.0
  %v718 = vmax.f32 %v684, 0.0
  %v719 = vld [vmem:[%s5] sm:$0xff]
  %v720 = vld [vmem:[%s5 + $0x8] sm:$0xff]
  %v721 = vld [vmem:[%s5 + $0x10] sm:$0xff]
  %v722 = vld [vmem:[%s5 + $0x18] sm:$0xff]
  %v723 = vld [vmem:[%s5 + $0x20] sm:$0xff]
  %v724 = vld [vmem:[%s5 + $0x28] sm:$0xff]
  %v725 = vld [vmem:[%s5 + $0x30] sm:$0xff]
  %v726 = vld [vmem:[%s5 + $0x38] sm:$0xff]
  %v727 = vld [vmem:[%s5 + $0x40] sm:$0xff]
  %v728 = vld [vmem:[%s5 + $0x48] sm:$0xff]
  %v729 = vld [vmem:[%s5 + $0x50] sm:$0xff]
  %v730 = vld [vmem:[%s5 + $0x58] sm:$0xff]
  %v731 = vld [vmem:[%s5 + $0x60] sm:$0xff]
  %v732 = vld [vmem:[%s5 + $0x68] sm:$0xff]
  %v733 = vld [vmem:[%s5 + $0x70] sm:$0xff]
  %v734 = vld [vmem:[%s5 + $0x78] sm:$0x1f]
  %v735 = vld [vmem:[%s6] sm:$0x7]
  %v737 = vsel %vm178, %v735, 0
  %739 = vmatprep.subr.mxu0 0.0
  %740 = vmatpush1.msra.mxu0 %v737
  %741 = vmatprep.subr.mxu0 0.0
  %742 = vmatpush1.msra.mxu0 0.0
  %743 = vmatprep.subr.mxu0 0.0
  %744 = vmatpush1.msra.mxu0 0.0
  %745 = vmatprep.subr.mxu0 0.0
  %746 = vmatpush1.msra.mxu0 0.0
  %747 = vmatprep.subr.mxu0 0.0
  %748 = vmatpush1.msra.mxu0 0.0
  %749 = vmatprep.subr.mxu0 0.0
  %750 = vmatpush1.msra.mxu0 0.0
  %751 = vmatprep.subr.mxu0 0.0
  %752 = vmatpush1.msra.mxu0 0.0
  %753 = vmatprep.subr.mxu0 0.0
  %754 = vmatpush1.msra.mxu0 0.0
  %755 = vmatprep.subr.mxu0 0.0
  %756 = vmatpush1.msra.mxu0 0.0
  %757 = vmatprep.subr.mxu0 0.0
  %758 = vmatpush1.msra.mxu0 0.0
  %759 = vmatprep.subr.mxu0 0.0
  %760 = vmatpush1.msra.mxu0 0.0
  %761 = vmatprep.subr.mxu0 0.0
  %762 = vmatpush1.msra.mxu0 0.0
  %763 = vmatprep.subr.mxu0 0.0
  %764 = vmatpush1.msra.mxu0 0.0
  %765 = vmatprep.subr.mxu0 0.0
  %766 = vmatpush1.msra.mxu0 0.0
  %767 = vmatprep.subr.mxu0 0.0
  %768 = vmatpush1.msra.mxu0 0.0
  %769 = vmatprep.subr.mxu0 0.0
  %770 = vmatpush1.msra.mxu0 0.0
  %771 = vmatprep.subr.mxu0 0.0
  %772 = vmatpush1.msra.mxu0 0.0
  %773 = vmatprep.subr.mxu0 0.0
  %774 = vmatpush1.msra.mxu0 0.0
  %775 = vmatprep.subr.mxu0 0.0
  %776 = vmatpush1.msra.mxu0 0.0
  %777 = vmatprep.subr.mxu0 0.0
  %778 = vmatpush1.msra.mxu0 0.0
  %779 = vmatprep.subr.mxu0 0.0
  %780 = vmatpush1.msra.mxu0 0.0
  %781 = vmatprep.subr.mxu0 0.0
  %782 = vmatpush1.msra.mxu0 0.0
  %783 = vmatprep.subr.mxu0 0.0
  %784 = vmatpush1.msra.mxu0 0.0
  %785 = vmatprep.subr.mxu0 0.0
  %786 = vmatpush1.msra.mxu0 0.0
  %787 = vmatprep.subr.mxu0 0.0
  %788 = vmatpush1.msra.mxu0 0.0
  %789 = vmatprep.subr.mxu0 0.0
  %790 = vmatpush1.msra.mxu0 0.0
  %791 = vmatprep.subr.mxu0 0.0
  %792 = vmatpush1.msra.mxu0 0.0
  %793 = vmatprep.subr.mxu0 0.0
  %794 = vmatpush1.msra.mxu0 0.0
  %795 = vmatprep.subr.mxu0 0.0
  %796 = vmatpush1.msra.mxu0 0.0
  %797 = vmatprep.subr.mxu0 0.0
  %798 = vmatpush1.msra.mxu0 0.0
  %799 = vmatprep.subr.mxu0 0.0
  %800 = vmatpush1.msra.mxu0 0.0
  %801 = vmatprep.subr.mxu0 0.0
  %802 = vmatpush1.msra.mxu0 0.0
  %803 = vmatprep.mubr.f32.mxu0 0.0
  %804 = vmatmul.mubr.f32.gmra.mrb[0].mxu0 %v83
  %v805 = vpop.f32.mrb[0].mxu0
  %v806 = vadd.f32 0.0, %v805
  %v807 = vpop.f32.mrb[0].mxu0
  %808 = vmatprep.mubr.f32.mxu0 0.0
  %809 = vmatmul.mubr.f32.gmra.mrb[0].mxu0 %v86
  %v810 = vpop.f32.mrb[0].mxu0
  %v811 = vadd.f32 0.0, %v810
  %v812 = vpop.f32.mrb[0].mxu0
  %813 = vmatprep.mubr.f32.mxu0 0.0
  %814 = vmatmul.mubr.f32.gmra.mrb[0].mxu0 %v89
  %v815 = vpop.f32.mrb[0].mxu0
  %v816 = vadd.f32 0.0, %v815
  %v817 = vpop.f32.mrb[0].mxu0
  %818 = vmatprep.mubr.f32.mxu0 0.0
  %819 = vmatmul.mubr.f32.gmra.mrb[0].mxu0 %v92
  %v820 = vpop.f32.mrb[0].mxu0
  %v821 = vadd.f32 0.0, %v820
  %v822 = vpop.f32.mrb[0].mxu0
  %823 = vmatprep.mubr.f32.mxu0 0.0
  %824 = vmatmul.mubr.f32.gmra.mrb[0].mxu0 %v95
  %v825 = vpop.f32.mrb[0].mxu0
  %v826 = vadd.f32 0.0, %v825
  %v827 = vpop.f32.mrb[0].mxu0
  %828 = vmatprep.mubr.f32.mxu0 0.0
  %829 = vmatmul.mubr.f32.gmra.mrb[0].mxu0 %v98
  %v830 = vpop.f32.mrb[0].mxu0
  %v831 = vadd.f32 0.0, %v830
  %v832 = vpop.f32.mrb[0].mxu0
  %833 = vmatprep.mubr.f32.mxu0 0.0
  %834 = vmatmul.mubr.f32.gmra.mrb[0].mxu0 %v101
  %v835 = vpop.f32.mrb[0].mxu0
  %v836 = vadd.f32 0.0, %v835
  %v837 = vpop.f32.mrb[0].mxu0
  %838 = vmatprep.mubr.f32.mxu0 0.0
  %839 = vmatmul.mubr.f32.gmra.mrb[0].mxu0 %v104
  %v840 = vpop.f32.mrb[0].mxu0
  %v841 = vadd.f32 0.0, %v840
  %v842 = vpop.f32.mrb[0].mxu0
  %843 = vmatprep.mubr.f32.mxu0 0.0
  %844 = vmatmul.mubr.f32.gmra.mrb[0].mxu0 %v107
  %v845 = vpop.f32.mrb[0].mxu0
  %v846 = vadd.f32 0.0, %v845
  %v847 = vpop.f32.mrb[0].mxu0
  %848 = vmatprep.mubr.f32.mxu0 0.0
  %849 = vmatmul.mubr.f32.gmra.mrb[0].mxu0 %v110
  %v850 = vpop.f32.mrb[0].mxu0
  %v851 = vadd.f32 0.0, %v850
  %v852 = vpop.f32.mrb[0].mxu0
  %853 = vmatprep.mubr.f32.mxu0 0.0
  %854 = vmatmul.mubr.f32.gmra.mrb[0].mxu0 %v113
  %v855 = vpop.f32.mrb[0].mxu0
  %v856 = vadd.f32 0.0, %v855
  %v857 = vpop.f32.mrb[0].mxu0
  %858 = vmatprep.mubr.f32.mxu0 0.0
  %859 = vmatmul.mubr.f32.gmra.mrb[0].mxu0 %v116
  %v860 = vpop.f32.mrb[0].mxu0
  %v861 = vadd.f32 0.0, %v860
  %v862 = vpop.f32.mrb[0].mxu0
  %863 = vmatprep.mubr.f32.mxu0 0.0
  %864 = vmatmul.mubr.f32.gmra.mrb[0].mxu0 %v119
  %v865 = vpop.f32.mrb[0].mxu0
  %v866 = vadd.f32 0.0, %v865
  %v867 = vpop.f32.mrb[0].mxu0
  %868 = vmatprep.mubr.f32.mxu0 0.0
  %869 = vmatmul.mubr.f32.gmra.mrb[0].mxu0 %v122
  %v870 = vpop.f32.mrb[0].mxu0
  %v871 = vadd.f32 0.0, %v870
  %v872 = vpop.f32.mrb[0].mxu0
  %873 = vmatprep.mubr.f32.mxu0 0.0
  %874 = vmatmul.mubr.f32.gmra.mrb[0].mxu0 %v125
  %v875 = vpop.f32.mrb[0].mxu0
  %v876 = vadd.f32 0.0, %v875
  %v877 = vpop.f32.mrb[0].mxu0
  %878 = vmatprep.mubr.f32.mxu0 0.0
  %879 = vmatmul.mubr.f32.gmra.mrb[0].mxu0 %v128
  %v880 = vpop.f32.mrb[0].mxu0
  %v881 = vadd.f32 0.0, %v880
  %v882 = vpop.f32.mrb[0].mxu0
  %883 = vmatprep.mubr.f32.mxu0 0.0
  %884 = vmatmul.mubr.f32.gmra.mrb[0].mxu0 %v131
  %v885 = vpop.f32.mrb[0].mxu0
  %v886 = vadd.f32 0.0, %v885
  %v887 = vpop.f32.mrb[0].mxu0
  %888 = vmatprep.mubr.f32.mxu0 0.0
  %889 = vmatmul.mubr.f32.gmra.mrb[0].mxu0 %v134
  %v890 = vpop.f32.mrb[0].mxu0
  %v891 = vadd.f32 0.0, %v890
  %v892 = vpop.f32.mrb[0].mxu0
  %893 = vmatprep.mubr.f32.mxu0 0.0
  %894 = vmatmul.mubr.f32.gmra.mrb[0].mxu0 %v137
  %v895 = vpop.f32.mrb[0].mxu0
  %v896 = vadd.f32 0.0, %v895
  %v897 = vpop.f32.mrb[0].mxu0
  %898 = vmatprep.mubr.f32.mxu0 0.0
  %899 = vmatmul.mubr.f32.gmra.mrb[0].mxu0 %v140
  %v900 = vpop.f32.mrb[0].mxu0
  %v901 = vadd.f32 0.0, %v900
  %v902 = vpop.f32.mrb[0].mxu0
  %903 = vmatprep.mubr.f32.mxu0 0.0
  %904 = vmatmul.mubr.f32.gmra.mrb[0].mxu0 %v143
  %v905 = vpop.f32.mrb[0].mxu0
  %v906 = vadd.f32 0.0, %v905
  %v907 = vpop.f32.mrb[0].mxu0
  %908 = vmatprep.mubr.f32.mxu0 0.0
  %909 = vmatmul.mubr.f32.gmra.mrb[0].mxu0 %v146
  %v910 = vpop.f32.mrb[0].mxu0
  %v911 = vadd.f32 0.0, %v910
  %v912 = vpop.f32.mrb[0].mxu0
  %913 = vmatprep.mubr.f32.mxu0 0.0
  %914 = vmatmul.mubr.f32.gmra.mrb[0].mxu0 %v149
  %v915 = vpop.f32.mrb[0].mxu0
  %v916 = vadd.f32 0.0, %v915
  %v917 = vpop.f32.mrb[0].mxu0
  %918 = vmatprep.mubr.f32.mxu0 0.0
  %919 = vmatmul.mubr.f32.gmra.mrb[0].mxu0 %v152
  %v920 = vpop.f32.mrb[0].mxu0
  %v921 = vadd.f32 0.0, %v920
  %v922 = vpop.f32.mrb[0].mxu0
  %923 = vmatprep.mubr.f32.mxu0 0.0
  %924 = vmatmul.mubr.f32.gmra.mrb[0].mxu0 %v155
  %v925 = vpop.f32.mrb[0].mxu0
  %v926 = vadd.f32 0.0, %v925
  %v927 = vpop.f32.mrb[0].mxu0
  %928 = vmatprep.mubr.f32.mxu0 0.0
  %929 = vmatmul.mubr.f32.gmra.mrb[0].mxu0 %v158
  %v930 = vpop.f32.mrb[0].mxu0
  %v931 = vadd.f32 0.0, %v930
  %v932 = vpop.f32.mrb[0].mxu0
  %933 = vmatprep.mubr.f32.mxu0 0.0
  %934 = vmatmul.mubr.f32.gmra.mrb[0].mxu0 %v161
  %v935 = vpop.f32.mrb[0].mxu0
  %v936 = vadd.f32 0.0, %v935
  %v937 = vpop.f32.mrb[0].mxu0
  %938 = vmatprep.mubr.f32.mxu0 0.0
  %939 = vmatmul.mubr.f32.gmra.mrb[0].mxu0 %v164
  %v940 = vpop.f32.mrb[0].mxu0
  %v941 = vadd.f32 0.0, %v940
  %v942 = vpop.f32.mrb[0].mxu0
  %943 = vmatprep.mubr.f32.mxu0 0.0
  %944 = vmatmul.mubr.f32.gmra.mrb[0].mxu0 %v167
  %v945 = vpop.f32.mrb[0].mxu0
  %v946 = vadd.f32 0.0, %v945
  %v947 = vpop.f32.mrb[0].mxu0
  %948 = vmatprep.mubr.f32.mxu0 0.0
  %949 = vmatmul.mubr.f32.gmra.mrb[0].mxu0 %v170
  %v950 = vpop.f32.mrb[0].mxu0
  %v951 = vadd.f32 0.0, %v950
  %v952 = vpop.f32.mrb[0].mxu0
  %953 = vmatprep.mubr.f32.mxu0 0.0
  %954 = vmatmul.mubr.f32.gmra.mrb[0].mxu0 %v173
  %v955 = vpop.f32.mrb[0].mxu0
  %v956 = vadd.f32 0.0, %v955
  %v957 = vpop.f32.mrb[0].mxu0
  %958 = vmatprep.mubr.f32.mxu0 0.0
  %959 = vmatmul.mubr.f32.gmra.mrb[0].mxu0 %v176
  %v960 = vpop.f32.mrb[0].mxu0
  %v961 = vadd.f32 0.0, %v960
  %v962 = vpop.f32.mrb[0].mxu0
  %963 = vdwg.mxu0
  %vm964 = vcmask 1022976
  %v966 = vsel %vm964, %v687, 0
  %v969 = vsel %vm964, %v688, 0
  %v972 = vsel %vm964, %v689, 0
  %v975 = vsel %vm964, %v690, 0
  %v978 = vsel %vm964, %v691, 0
  %v981 = vsel %vm964, %v692, 0
  %v984 = vsel %vm964, %v693, 0
  %v987 = vsel %vm964, %v694, 0
  %v990 = vsel %vm964, %v695, 0
  %v993 = vsel %vm964, %v696, 0
  %v996 = vsel %vm964, %v697, 0
  %v999 = vsel %vm964, %v698, 0
  %v1002 = vsel %vm964, %v699, 0
  %v1005 = vsel %vm964, %v700, 0
  %v1008 = vsel %vm964, %v701, 0
  %v1011 = vsel %vm964, %v702, 0
  %v1014 = vsel %vm964, %v703, 0
  %v1017 = vsel %vm964, %v704, 0
  %v1020 = vsel %vm964, %v705, 0
  %v1023 = vsel %vm964, %v706, 0
  %v1026 = vsel %vm964, %v707, 0
  %v1029 = vsel %vm964, %v708, 0
  %v1032 = vsel %vm964, %v709, 0
  %v1035 = vsel %vm964, %v710, 0
  %v1038 = vsel %vm964, %v711, 0
  %v1041 = vsel %vm964, %v712, 0
  %v1044 = vsel %vm964, %v713, 0
  %v1047 = vsel %vm964, %v714, 0
  %v1050 = vsel %vm964, %v715, 0
  %v1053 = vsel %vm964, %v716, 0
  %v1056 = vsel %vm964, %v717, 0
  %v1059 = vsel %vm964, %v718, 0
  %vm1061 = vcmask 1044480
  %v1063 = vsel %vm1061, %v734, 0
  %1065 = vmatprep.subr.mxu0 0.0
  %1066 = vmatpush1.msra.mxu0 %v719
  %1067 = vmatprep.subr.mxu0 0.0
  %1068 = vmatpush1.msra.mxu0 %v720
  %1069 = vmatprep.subr.mxu0 0.0
  %1070 = vmatpush1.msra.mxu0 %v721
  %1071 = vmatprep.subr.mxu0 0.0
  %1072 = vmatpush1.msra.mxu0 %v722
  %1073 = vmatprep.subr.mxu0 0.0
  %1074 = vmatpush1.msra.mxu0 %v723
  %1075 = vmatprep.subr.mxu0 0.0
  %1076 = vmatpush1.msra.mxu0 %v724
  %1077 = vmatprep.subr.mxu0 0.0
  %1078 = vmatpush1.msra.mxu0 %v725
  %1079 = vmatprep.subr.mxu0 0.0
  %1080 = vmatpush1.msra.mxu0 %v726
  %1081 = vmatprep.subr.mxu0 0.0
  %1082 = vmatpush1.msra.mxu0 %v727
  %1083 = vmatprep.subr.mxu0 0.0
  %1084 = vmatpush1.msra.mxu0 %v728
  %1085 = vmatprep.subr.mxu0 0.0
  %1086 = vmatpush1.msra.mxu0 %v729
  %1087 = vmatprep.subr.mxu0 0.0
  %1088 = vmatpush1.msra.mxu0 %v730
  %1089 = vmatprep.subr.mxu0 0.0
  %1090 = vmatpush1.msra.mxu0 %v731
  %1091 = vmatprep.subr.mxu0 0.0
  %1092 = vmatpush1.msra.mxu0 %v732
  %1093 = vmatprep.subr.mxu0 0.0
  %1094 = vmatpush1.msra.mxu0 %v733
  %1095 = vmatprep.subr.mxu0 0.0
  %1096 = vmatpush1.msra.mxu0 %v1063
  %1097 = vmatprep.subr.mxu0 0.0
  %1098 = vmatpush1.msra.mxu0 0.0
  %1099 = vmatprep.subr.mxu0 0.0
  %1100 = vmatpush1.msra.mxu0 0.0
  %1101 = vmatprep.subr.mxu0 0.0
  %1102 = vmatpush1.msra.mxu0 0.0
  %1103 = vmatprep.subr.mxu0 0.0
  %1104 = vmatpush1.msra.mxu0 0.0
  %1105 = vmatprep.subr.mxu0 0.0
  %1106 = vmatpush1.msra.mxu0 0.0
  %1107 = vmatprep.subr.mxu0 0.0
  %1108 = vmatpush1.msra.mxu0 0.0
  %1109 = vmatprep.subr.mxu0 0.0
  %1110 = vmatpush1.msra.mxu0 0.0
  %1111 = vmatprep.subr.mxu0 0.0
  %1112 = vmatpush1.msra.mxu0 0.0
  %1113 = vmatprep.subr.mxu0 0.0
  %1114 = vmatpush1.msra.mxu0 0.0
  %1115 = vmatprep.subr.mxu0 0.0
  %1116 = vmatpush1.msra.mxu0 0.0
  %1117 = vmatprep.subr.mxu0 0.0
  %1118 = vmatpush1.msra.mxu0 0.0
  %1119 = vmatprep.subr.mxu0 0.0
  %1120 = vmatpush1.msra.mxu0 0.0
  %1121 = vmatprep.subr.mxu0 0.0
  %1122 = vmatpush1.msra.mxu0 0.0
  %1123 = vmatprep.subr.mxu0 0.0
  %1124 = vmatpush1.msra.mxu0 0.0
  %1125 = vmatprep.subr.mxu0 0.0
  %1126 = vmatpush1.msra.mxu0 0.0
  %1127 = vmatprep.subr.mxu0 0.0
  %1128 = vmatpush1.msra.mxu0 0.0
  %1129 = vmatprep.mubr.f32.mxu0 0.0
  %1130 = vmatmul.mubr.f32.gmra.mrb[0].mxu0 %v966
  %v1131 = vpop.f32.mrb[0].mxu0
  %v1132 = vadd.f32 %v806, %v1131
  %v1133 = vpop.f32.mrb[0].mxu0
  %1134 = vmatprep.mubr.f32.mxu0 0.0
  %1135 = vmatmul.mubr.f32.gmra.mrb[0].mxu0 %v969
  %v1136 = vpop.f32.mrb[0].mxu0
  %v1137 = vadd.f32 %v811, %v1136
  %v1138 = vpop.f32.mrb[0].mxu0
  %1139 = vmatprep.mubr.f32.mxu0 0.0
  %1140 = vmatmul.mubr.f32.gmra.mrb[0].mxu0 %v972
  %v1141 = vpop.f32.mrb[0].mxu0
  %v1142 = vadd.f32 %v816, %v1141
  %v1143 = vpop.f32.mrb[0].mxu0
  %1144 = vmatprep.mubr.f32.mxu0 0.0
  %1145 = vmatmul.mubr.f32.gmra.mrb[0].mxu0 %v975
  %v1146 = vpop.f32.mrb[0].mxu0
  %v1147 = vadd.f32 %v821, %v1146
  %v1148 = vpop.f32.mrb[0].mxu0
  %1149 = vmatprep.mubr.f32.mxu0 0.0
  %1150 = vmatmul.mubr.f32.gmra.mrb[0].mxu0 %v978
  %v1151 = vpop.f32.mrb[0].mxu0
  %v1152 = vadd.f32 %v826, %v1151
  %v1153 = vpop.f32.mrb[0].mxu0
  %1154 = vmatprep.mubr.f32.mxu0 0.0
  %1155 = vmatmul.mubr.f32.gmra.mrb[0].mxu0 %v981
  %v1156 = vpop.f32.mrb[0].mxu0
  %v1157 = vadd.f32 %v831, %v1156
  %v1158 = vpop.f32.mrb[0].mxu0
  %1159 = vmatprep.mubr.f32.mxu0 0.0
  %1160 = vmatmul.mubr.f32.gmra.mrb[0].mxu0 %v984
  %v1161 = vpop.f32.mrb[0].mxu0
  %v1162 = vadd.f32 %v836, %v1161
  %v1163 = vpop.f32.mrb[0].mxu0
  %1164 = vmatprep.mubr.f32.mxu0 0.0
  %1165 = vmatmul.mubr.f32.gmra.mrb[0].mxu0 %v987
  %v1166 = vpop.f32.mrb[0].mxu0
  %v1167 = vadd.f32 %v841, %v1166
  %v1168 = vpop.f32.mrb[0].mxu0
  %1169 = vmatprep.mubr.f32.mxu0 0.0
  %1170 = vmatmul.mubr.f32.gmra.mrb[0].mxu0 %v990
  %v1171 = vpop.f32.mrb[0].mxu0
  %v1172 = vadd.f32 %v846, %v1171
  %v1173 = vpop.f32.mrb[0].mxu0
  %1174 = vmatprep.mubr.f32.mxu0 0.0
  %1175 = vmatmul.mubr.f32.gmra.mrb[0].mxu0 %v993
  %v1176 = vpop.f32.mrb[0].mxu0
  %v1177 = vadd.f32 %v851, %v1176
  %v1178 = vpop.f32.mrb[0].mxu0
  %1179 = vmatprep.mubr.f32.mxu0 0.0
  %1180 = vmatmul.mubr.f32.gmra.mrb[0].mxu0 %v996
  %v1181 = vpop.f32.mrb[0].mxu0
  %v1182 = vadd.f32 %v856, %v1181
  %v1183 = vpop.f32.mrb[0].mxu0
  %1184 = vmatprep.mubr.f32.mxu0 0.0
  %1185 = vmatmul.mubr.f32.gmra.mrb[0].mxu0 %v999
  %v1186 = vpop.f32.mrb[0].mxu0
  %v1187 = vadd.f32 %v861, %v1186
  %v1188 = vpop.f32.mrb[0].mxu0
  %1189 = vmatprep.mubr.f32.mxu0 0.0
  %1190 = vmatmul.mubr.f32.gmra.mrb[0].mxu0 %v1002
  %v1191 = vpop.f32.mrb[0].mxu0
  %v1192 = vadd.f32 %v866, %v1191
  %v1193 = vpop.f32.mrb[0].mxu0
  %1194 = vmatprep.mubr.f32.mxu0 0.0
  %1195 = vmatmul.mubr.f32.gmra.mrb[0].mxu0 %v1005
  %v1196 = vpop.f32.mrb[0].mxu0
  %v1197 = vadd.f32 %v871, %v1196
  %v1198 = vpop.f32.mrb[0].mxu0
  %1199 = vmatprep.mubr.f32.mxu0 0.0
  %1200 = vmatmul.mubr.f32.gmra.mrb[0].mxu0 %v1008
  %v1201 = vpop.f32.mrb[0].mxu0
  %v1202 = vadd.f32 %v876, %v1201
  %v1203 = vpop.f32.mrb[0].mxu0
  %1204 = vmatprep.mubr.f32.mxu0 0.0
  %1205 = vmatmul.mubr.f32.gmra.mrb[0].mxu0 %v1011
  %v1206 = vpop.f32.mrb[0].mxu0
  %v1207 = vadd.f32 %v881, %v1206
  %v1208 = vpop.f32.mrb[0].mxu0
  %1209 = vmatprep.mubr.f32.mxu0 0.0
  %1210 = vmatmul.mubr.f32.gmra.mrb[0].mxu0 %v1014
  %v1211 = vpop.f32.mrb[0].mxu0
  %v1212 = vadd.f32 %v886, %v1211
  %v1213 = vpop.f32.mrb[0].mxu0
  %1214 = vmatprep.mubr.f32.mxu0 0.0
  %1215 = vmatmul.mubr.f32.gmra.mrb[0].mxu0 %v1017
  %v1216 = vpop.f32.mrb[0].mxu0
  %v1217 = vadd.f32 %v891, %v1216
  %v1218 = vpop.f32.mrb[0].mxu0
  %1219 = vmatprep.mubr.f32.mxu0 0.0
  %1220 = vmatmul.mubr.f32.gmra.mrb[0].mxu0 %v1020
  %v1221 = vpop.f32.mrb[0].mxu0
  %v1222 = vadd.f32 %v896, %v1221
  %v1223 = vpop.f32.mrb[0].mxu0
  %1224 = vmatprep.mubr.f32.mxu0 0.0
  %1225 = vmatmul.mubr.f32.gmra.mrb[0].mxu0 %v1023
  %v1226 = vpop.f32.mrb[0].mxu0
  %v1227 = vadd.f32 %v901, %v1226
  %v1228 = vpop.f32.mrb[0].mxu0
  %1229 = vmatprep.mubr.f32.mxu0 0.0
  %1230 = vmatmul.mubr.f32.gmra.mrb[0].mxu0 %v1026
  %v1231 = vpop.f32.mrb[0].mxu0
  %v1232 = vadd.f32 %v906, %v1231
  %v1233 = vpop.f32.mrb[0].mxu0
  %1234 = vmatprep.mubr.f32.mxu0 0.0
  %1235 = vmatmul.mubr.f32.gmra.mrb[0].mxu0 %v1029
  %v1236 = vpop.f32.mrb[0].mxu0
  %v1237 = vadd.f32 %v911, %v1236
  %v1238 = vpop.f32.mrb[0].mxu0
  %1239 = vmatprep.mubr.f32.mxu0 0.0
  %1240 = vmatmul.mubr.f32.gmra.mrb[0].mxu0 %v1032
  %v1241 = vpop.f32.mrb[0].mxu0
  %v1242 = vadd.f32 %v916, %v1241
  %v1243 = vpop.f32.mrb[0].mxu0
  %1244 = vmatprep.mubr.f32.mxu0 0.0
  %1245 = vmatmul.mubr.f32.gmra.mrb[0].mxu0 %v1035
  %v1246 = vpop.f32.mrb[0].mxu0
  %v1247 = vadd.f32 %v921, %v1246
  %v1248 = vpop.f32.mrb[0].mxu0
  %1249 = vmatprep.mubr.f32.mxu0 0.0
  %1250 = vmatmul.mubr.f32.gmra.mrb[0].mxu0 %v1038
  %v1251 = vpop.f32.mrb[0].mxu0
  %v1252 = vadd.f32 %v926, %v1251
  %v1253 = vpop.f32.mrb[0].mxu0
  %1254 = vmatprep.mubr.f32.mxu0 0.0
  %1255 = vmatmul.mubr.f32.gmra.mrb[0].mxu0 %v1041
  %v1256 = vpop.f32.mrb[0].mxu0
  %v1257 = vadd.f32 %v931, %v1256
  %v1258 = vpop.f32.mrb[0].mxu0
  %1259 = vmatprep.mubr.f32.mxu0 0.0
  %1260 = vmatmul.mubr.f32.gmra.mrb[0].mxu0 %v1044
  %v1261 = vpop.f32.mrb[0].mxu0
  %v1262 = vadd.f32 %v936, %v1261
  %v1263 = vpop.f32.mrb[0].mxu0
  %1264 = vmatprep.mubr.f32.mxu0 0.0
  %1265 = vmatmul.mubr.f32.gmra.mrb[0].mxu0 %v1047
  %v1266 = vpop.f32.mrb[0].mxu0
  %v1267 = vadd.f32 %v941, %v1266
  %v1268 = vpop.f32.mrb[0].mxu0
  %1269 = vmatprep.mubr.f32.mxu0 0.0
  %1270 = vmatmul.mubr.f32.gmra.mrb[0].mxu0 %v1050
  %v1271 = vpop.f32.mrb[0].mxu0
  %v1272 = vadd.f32 %v946, %v1271
  %v1273 = vpop.f32.mrb[0].mxu0
  %1274 = vmatprep.mubr.f32.mxu0 0.0
  %1275 = vmatmul.mubr.f32.gmra.mrb[0].mxu0 %v1053
  %v1276 = vpop.f32.mrb[0].mxu0
  %v1277 = vadd.f32 %v951, %v1276
  %v1278 = vpop.f32.mrb[0].mxu0
  %1279 = vmatprep.mubr.f32.mxu0 0.0
  %1280 = vmatmul.mubr.f32.gmra.mrb[0].mxu0 %v1056
  %v1281 = vpop.f32.mrb[0].mxu0
  %v1282 = vadd.f32 %v956, %v1281
  %v1283 = vpop.f32.mrb[0].mxu0
  %1284 = vmatprep.mubr.f32.mxu0 0.0
  %1285 = vmatmul.mubr.f32.gmra.mrb[0].mxu0 %v1059
  %v1286 = vpop.f32.mrb[0].mxu0
  %v1287 = vadd.f32 %v961, %v1286
  %v1288 = vpop.f32.mrb[0].mxu0
  %1289 = vdwg.mxu0
  %v1290 = vld [vmem:[%s7] sm:$0x1]
  %v1292 = vlaneseq
  %v1293 = vshrl.u32 %v1292, 7
  %v1294 = vsub.s32 0, %v1293
  %v1295 = vrot.slane %v1290, %v1294
  %v1297 = vadd.f32 %v1132, %v1295
  %v1298 = vadd.f32 %v1137, %v1295
  %v1299 = vadd.f32 %v1142, %v1295
  %v1300 = vadd.f32 %v1147, %v1295
  %v1301 = vadd.f32 %v1152, %v1295
  %v1302 = vadd.f32 %v1157, %v1295
  %v1303 = vadd.f32 %v1162, %v1295
  %v1304 = vadd.f32 %v1167, %v1295
  %v1305 = vadd.f32 %v1172, %v1295
  %v1306 = vadd.f32 %v1177, %v1295
  %v1307 = vadd.f32 %v1182, %v1295
  %v1308 = vadd.f32 %v1187, %v1295
  %v1309 = vadd.f32 %v1192, %v1295
  %v1310 = vadd.f32 %v1197, %v1295
  %v1311 = vadd.f32 %v1202, %v1295
  %v1312 = vadd.f32 %v1207, %v1295
  %v1313 = vadd.f32 %v1212, %v1295
  %v1314 = vadd.f32 %v1217, %v1295
  %v1315 = vadd.f32 %v1222, %v1295
  %v1316 = vadd.f32 %v1227, %v1295
  %v1317 = vadd.f32 %v1232, %v1295
  %v1318 = vadd.f32 %v1237, %v1295
  %v1319 = vadd.f32 %v1242, %v1295
  %v1320 = vadd.f32 %v1247, %v1295
  %v1321 = vadd.f32 %v1252, %v1295
  %v1322 = vadd.f32 %v1257, %v1295
  %v1323 = vadd.f32 %v1262, %v1295
  %v1324 = vadd.f32 %v1267, %v1295
  %v1325 = vadd.f32 %v1272, %v1295
  %v1326 = vadd.f32 %v1277, %v1295
  %v1327 = vadd.f32 %v1282, %v1295
  %v1328 = vadd.f32 %v1287, %v1295
  %v1329 = vmax.f32 %v1297, 0.0
  %v1330 = vmax.f32 %v1298, 0.0
  %v1331 = vmax.f32 %v1299, 0.0
  %v1332 = vmax.f32 %v1300, 0.0
  %v1333 = vmax.f32 %v1301, 0.0
  %v1334 = vmax.f32 %v1302, 0.0
  %v1335 = vmax.f32 %v1303, 0.0
  %v1336 = vmax.f32 %v1304, 0.0
  %v1337 = vmax.f32 %v1305, 0.0
  %v1338 = vmax.f32 %v1306, 0.0
  %v1339 = vmax.f32 %v1307, 0.0
  %v1340 = vmax.f32 %v1308, 0.0
  %v1341 = vmax.f32 %v1309, 0.0
  %v1342 = vmax.f32 %v1310, 0.0
  %v1343 = vmax.f32 %v1311, 0.0
  %v1344 = vmax.f32 %v1312, 0.0
  %v1345 = vmax.f32 %v1313, 0.0
  %v1346 = vmax.f32 %v1314, 0.0
  %v1347 = vmax.f32 %v1315, 0.0
  %v1348 = vmax.f32 %v1316, 0.0
  %v1349 = vmax.f32 %v1317, 0.0
  %v1350 = vmax.f32 %v1318, 0.0
  %v1351 = vmax.f32 %v1319, 0.0
  %v1352 = vmax.f32 %v1320, 0.0
  %v1353 = vmax.f32 %v1321, 0.0
  %v1354 = vmax.f32 %v1322, 0.0
  %v1355 = vmax.f32 %v1323, 0.0
  %v1356 = vmax.f32 %v1324, 0.0
  %v1357 = vmax.f32 %v1325, 0.0
  %v1358 = vmax.f32 %v1326, 0.0
  %v1359 = vmax.f32 %v1327, 0.0
  %v1360 = vmax.f32 %v1328, 0.0
  %v1361 = vld [vmem:[%s8] sm:$0xff]
  %v1362 = vld [vmem:[%s8 + $0x8] sm:$0xff]
  %v1363 = vld [vmem:[%s8 + $0x10] sm:$0xff]
  %v1364 = vld [vmem:[%s8 + $0x18] sm:$0xff]
  %v1365 = vld [vmem:[%s8 + $0x20] sm:$0xff]
  %v1366 = vld [vmem:[%s8 + $0x28] sm:$0xff]
  %v1367 = vld [vmem:[%s8 + $0x30] sm:$0xff]
  %v1368 = vld [vmem:[%s8 + $0x38] sm:$0xff]
  %v1369 = vld [vmem:[%s8 + $0x40] sm:$0xff]
  %v1370 = vld [vmem:[%s8 + $0x48] sm:$0xff]
  %v1371 = vld [vmem:[%s8 + $0x50] sm:$0xff]
  %v1372 = vld [vmem:[%s8 + $0x58] sm:$0xff]
  %v1373 = vld [vmem:[%s8 + $0x60] sm:$0xff]
  %v1374 = vld [vmem:[%s8 + $0x68] sm:$0xff]
  %v1375 = vld [vmem:[%s8 + $0x70] sm:$0xff]
  %v1376 = vld [vmem:[%s8 + $0x78] sm:$0xff]
  %v1377 = vld [vmem:[%s9] sm:$0x1]
  %v1379 = vlaneseq
  %v1380 = vshrl.u32 %v1379, 7
  %v1381 = vsub.s32 0, %v1380
  %v1382 = vrot.slane %v1377, %v1381
  %1384 = vmatprep.subr.mxu0 0.0
  %1385 = vmatpush1.msra.mxu0 %v1361
  %1386 = vmatprep.subr.mxu0 0.0
  %1387 = vmatpush1.msra.mxu0 %v1362
  %1388 = vmatprep.subr.mxu0 0.0
  %1389 = vmatpush1.msra.mxu0 %v1363
  %1390 = vmatprep.subr.mxu0 0.0
  %1391 = vmatpush1.msra.mxu0 %v1364
  %1392 = vmatprep.subr.mxu0 0.0
  %1393 = vmatpush1.msra.mxu0 %v1365
  %1394 = vmatprep.subr.mxu0 0.0
  %1395 = vmatpush1.msra.mxu0 %v1366
  %1396 = vmatprep.subr.mxu0 0.0
  %1397 = vmatpush1.msra.mxu0 %v1367
  %1398 = vmatprep.subr.mxu0 0.0
  %1399 = vmatpush1.msra.mxu0 %v1368
  %1400 = vmatprep.subr.mxu0 0.0
  %1401 = vmatpush1.msra.mxu0 %v1369
  %1402 = vmatprep.subr.mxu0 0.0
  %1403 = vmatpush1.msra.mxu0 %v1370
  %1404 = vmatprep.subr.mxu0 0.0
  %1405 = vmatpush1.msra.mxu0 %v1371
  %1406 = vmatprep.subr.mxu0 0.0
  %1407 = vmatpush1.msra.mxu0 %v1372
  %1408 = vmatprep.subr.mxu0 0.0
  %1409 = vmatpush1.msra.mxu0 %v1373
  %1410 = vmatprep.subr.mxu0 0.0
  %1411 = vmatpush1.msra.mxu0 %v1374
  %1412 = vmatprep.subr.mxu0 0.0
  %1413 = vmatpush1.msra.mxu0 %v1375
  %1414 = vmatprep.subr.mxu0 0.0
  %1415 = vmatpush1.msra.mxu0 %v1376
  %1416 = vmatprep.subr.mxu0 0.0
  %1417 = vmatpush1.msra.mxu0 0.0
  %1418 = vmatprep.subr.mxu0 0.0
  %1419 = vmatpush1.msra.mxu0 0.0
  %1420 = vmatprep.subr.mxu0 0.0
  %1421 = vmatpush1.msra.mxu0 0.0
  %1422 = vmatprep.subr.mxu0 0.0
  %1423 = vmatpush1.msra.mxu0 0.0
  %1424 = vmatprep.subr.mxu0 0.0
  %1425 = vmatpush1.msra.mxu0 0.0
  %1426 = vmatprep.subr.mxu0 0.0
  %1427 = vmatpush1.msra.mxu0 0.0
  %1428 = vmatprep.subr.mxu0 0.0
  %1429 = vmatpush1.msra.mxu0 0.0
  %1430 = vmatprep.subr.mxu0 0.0
  %1431 = vmatpush1.msra.mxu0 0.0
  %1432 = vmatprep.subr.mxu0 0.0
  %1433 = vmatpush1.msra.mxu0 0.0
  %1434 = vmatprep.subr.mxu0 0.0
  %1435 = vmatpush1.msra.mxu0 0.0
  %1436 = vmatprep.subr.mxu0 0.0
  %1437 = vmatpush1.msra.mxu0 0.0
  %1438 = vmatprep.subr.mxu0 0.0
  %1439 = vmatpush1.msra.mxu0 0.0
  %1440 = vmatprep.subr.mxu0 0.0
  %1441 = vmatpush1.msra.mxu0 0.0
  %1442 = vmatprep.subr.mxu0 0.0
  %1443 = vmatpush1.msra.mxu0 0.0
  %1444 = vmatprep.subr.mxu0 0.0
  %1445 = vmatpush1.msra.mxu0 0.0
  %1446 = vmatprep.subr.mxu0 0.0
  %1447 = vmatpush1.msra.mxu0 0.0
  %1448 = vmatprep.mubr.f32.mxu0 0.0
  %1449 = vmatmul.mubr.f32.gmra.mrb[0].mxu0 %v1329
  %v1450 = vpop.f32.mrb[0].mxu0
  %v1451 = vadd.f32 %v1382, %v1450
  %v1452 = vpop.f32.mrb[0].mxu0
  %1453 = vmatprep.mubr.f32.mxu0 0.0
  %1454 = vmatmul.mubr.f32.gmra.mrb[0].mxu0 %v1330
  %v1455 = vpop.f32.mrb[0].mxu0
  %v1456 = vadd.f32 %v1382, %v1455
  %v1457 = vpop.f32.mrb[0].mxu0
  %1458 = vmatprep.mubr.f32.mxu0 0.0
  %1459 = vmatmul.mubr.f32.gmra.mrb[0].mxu0 %v1331
  %v1460 = vpop.f32.mrb[0].mxu0
  %v1461 = vadd.f32 %v1382, %v1460
  %v1462 = vpop.f32.mrb[0].mxu0
  %1463 = vmatprep.mubr.f32.mxu0 0.0
  %1464 = vmatmul.mubr.f32.gmra.mrb[0].mxu0 %v1332
  %v1465 = vpop.f32.mrb[0].mxu0
  %v1466 = vadd.f32 %v1382, %v1465
  %v1467 = vpop.f32.mrb[0].mxu0
  %1468 = vmatprep.mubr.f32.mxu0 0.0
  %1469 = vmatmul.mubr.f32.gmra.mrb[0].mxu0 %v1333
  %v1470 = vpop.f32.mrb[0].mxu0
  %v1471 = vadd.f32 %v1382, %v1470
  %v1472 = vpop.f32.mrb[0].mxu0
  %1473 = vmatprep.mubr.f32.mxu0 0.0
  %1474 = vmatmul.mubr.f32.gmra.mrb[0].mxu0 %v1334
  %v1475 = vpop.f32.mrb[0].mxu0
  %v1476 = vadd.f32 %v1382, %v1475
  %v1477 = vpop.f32.mrb[0].mxu0
  %1478 = vmatprep.mubr.f32.mxu0 0.0
  %1479 = vmatmul.mubr.f32.gmra.mrb[0].mxu0 %v1335
  %v1480 = vpop.f32.mrb[0].mxu0
  %v1481 = vadd.f32 %v1382, %v1480
  %v1482 = vpop.f32.mrb[0].mxu0
  %1483 = vmatprep.mubr.f32.mxu0 0.0
  %1484 = vmatmul.mubr.f32.gmra.mrb[0].mxu0 %v1336
  %v1485 = vpop.f32.mrb[0].mxu0
  %v1486 = vadd.f32 %v1382, %v1485
  %v1487 = vpop.f32.mrb[0].mxu0
  %1488 = vmatprep.mubr.f32.mxu0 0.0
  %1489 = vmatmul.mubr.f32.gmra.mrb[0].mxu0 %v1337
  %v1490 = vpop.f32.mrb[0].mxu0
  %v1491 = vadd.f32 %v1382, %v1490
  %v1492 = vpop.f32.mrb[0].mxu0
  %1493 = vmatprep.mubr.f32.mxu0 0.0
  %1494 = vmatmul.mubr.f32.gmra.mrb[0].mxu0 %v1338
  %v1495 = vpop.f32.mrb[0].mxu0
  %v1496 = vadd.f32 %v1382, %v1495
  %v1497 = vpop.f32.mrb[0].mxu0
  %1498 = vmatprep.mubr.f32.mxu0 0.0
  %1499 = vmatmul.mubr.f32.gmra.mrb[0].mxu0 %v1339
  %v1500 = vpop.f32.mrb[0].mxu0
  %v1501 = vadd.f32 %v1382, %v1500
  %v1502 = vpop.f32.mrb[0].mxu0
  %1503 = vmatprep.mubr.f32.mxu0 0.0
  %1504 = vmatmul.mubr.f32.gmra.mrb[0].mxu0 %v1340
  %v1505 = vpop.f32.mrb[0].mxu0
  %v1506 = vadd.f32 %v1382, %v1505
  %v1507 = vpop.f32.mrb[0].mxu0
  %1508 = vmatprep.mubr.f32.mxu0 0.0
  %1509 = vmatmul.mubr.f32.gmra.mrb[0].mxu0 %v1341
  %v1510 = vpop.f32.mrb[0].mxu0
  %v1511 = vadd.f32 %v1382, %v1510
  %v1512 = vpop.f32.mrb[0].mxu0
  %1513 = vmatprep.mubr.f32.mxu0 0.0
  %1514 = vmatmul.mubr.f32.gmra.mrb[0].mxu0 %v1342
  %v1515 = vpop.f32.mrb[0].mxu0
  %v1516 = vadd.f32 %v1382, %v1515
  %v1517 = vpop.f32.mrb[0].mxu0
  %1518 = vmatprep.mubr.f32.mxu0 0.0
  %1519 = vmatmul.mubr.f32.gmra.mrb[0].mxu0 %v1343
  %v1520 = vpop.f32.mrb[0].mxu0
  %v1521 = vadd.f32 %v1382, %v1520
  %v1522 = vpop.f32.mrb[0].mxu0
  %1523 = vmatprep.mubr.f32.mxu0 0.0
  %1524 = vmatmul.mubr.f32.gmra.mrb[0].mxu0 %v1344
  %v1525 = vpop.f32.mrb[0].mxu0
  %v1526 = vadd.f32 %v1382, %v1525
  %v1527 = vpop.f32.mrb[0].mxu0
  %1528 = vmatprep.mubr.f32.mxu0 0.0
  %1529 = vmatmul.mubr.f32.gmra.mrb[0].mxu0 %v1345
  %v1530 = vpop.f32.mrb[0].mxu0
  %v1531 = vadd.f32 %v1382, %v1530
  %v1532 = vpop.f32.mrb[0].mxu0
  %1533 = vmatprep.mubr.f32.mxu0 0.0
  %1534 = vmatmul.mubr.f32.gmra.mrb[0].mxu0 %v1346
  %v1535 = vpop.f32.mrb[0].mxu0
  %v1536 = vadd.f32 %v1382, %v1535
  %v1537 = vpop.f32.mrb[0].mxu0
  %1538 = vmatprep.mubr.f32.mxu0 0.0
  %1539 = vmatmul.mubr.f32.gmra.mrb[0].mxu0 %v1347
  %v1540 = vpop.f32.mrb[0].mxu0
  %v1541 = vadd.f32 %v1382, %v1540
  %v1542 = vpop.f32.mrb[0].mxu0
  %1543 = vmatprep.mubr.f32.mxu0 0.0
  %1544 = vmatmul.mubr.f32.gmra.mrb[0].mxu0 %v1348
  %v1545 = vpop.f32.mrb[0].mxu0
  %v1546 = vadd.f32 %v1382, %v1545
  %v1547 = vpop.f32.mrb[0].mxu0
  %1548 = vmatprep.mubr.f32.mxu0 0.0
  %1549 = vmatmul.mubr.f32.gmra.mrb[0].mxu0 %v1349
  %v1550 = vpop.f32.mrb[0].mxu0
  %v1551 = vadd.f32 %v1382, %v1550
  %v1552 = vpop.f32.mrb[0].mxu0
  %1553 = vmatprep.mubr.f32.mxu0 0.0
  %1554 = vmatmul.mubr.f32.gmra.mrb[0].mxu0 %v1350
  %v1555 = vpop.f32.mrb[0].mxu0
  %v1556 = vadd.f32 %v1382, %v1555
  %v1557 = vpop.f32.mrb[0].mxu0
  %1558 = vmatprep.mubr.f32.mxu0 0.0
  %1559 = vmatmul.mubr.f32.gmra.mrb[0].mxu0 %v1351
  %v1560 = vpop.f32.mrb[0].mxu0
  %v1561 = vadd.f32 %v1382, %v1560
  %v1562 = vpop.f32.mrb[0].mxu0
  %1563 = vmatprep.mubr.f32.mxu0 0.0
  %1564 = vmatmul.mubr.f32.gmra.mrb[0].mxu0 %v1352
  %v1565 = vpop.f32.mrb[0].mxu0
  %v1566 = vadd.f32 %v1382, %v1565
  %v1567 = vpop.f32.mrb[0].mxu0
  %1568 = vmatprep.mubr.f32.mxu0 0.0
  %1569 = vmatmul.mubr.f32.gmra.mrb[0].mxu0 %v1353
  %v1570 = vpop.f32.mrb[0].mxu0
  %v1571 = vadd.f32 %v1382, %v1570
  %v1572 = vpop.f32.mrb[0].mxu0
  %1573 = vmatprep.mubr.f32.mxu0 0.0
  %1574 = vmatmul.mubr.f32.gmra.mrb[0].mxu0 %v1354
  %v1575 = vpop.f32.mrb[0].mxu0
  %v1576 = vadd.f32 %v1382, %v1575
  %v1577 = vpop.f32.mrb[0].mxu0
  %1578 = vmatprep.mubr.f32.mxu0 0.0
  %1579 = vmatmul.mubr.f32.gmra.mrb[0].mxu0 %v1355
  %v1580 = vpop.f32.mrb[0].mxu0
  %v1581 = vadd.f32 %v1382, %v1580
  %v1582 = vpop.f32.mrb[0].mxu0
  %1583 = vmatprep.mubr.f32.mxu0 0.0
  %1584 = vmatmul.mubr.f32.gmra.mrb[0].mxu0 %v1356
  %v1585 = vpop.f32.mrb[0].mxu0
  %v1586 = vadd.f32 %v1382, %v1585
  %v1587 = vpop.f32.mrb[0].mxu0
  %1588 = vmatprep.mubr.f32.mxu0 0.0
  %1589 = vmatmul.mubr.f32.gmra.mrb[0].mxu0 %v1357
  %v1590 = vpop.f32.mrb[0].mxu0
  %v1591 = vadd.f32 %v1382, %v1590
  %v1592 = vpop.f32.mrb[0].mxu0
  %1593 = vmatprep.mubr.f32.mxu0 0.0
  %1594 = vmatmul.mubr.f32.gmra.mrb[0].mxu0 %v1358
  %v1595 = vpop.f32.mrb[0].mxu0
  %v1596 = vadd.f32 %v1382, %v1595
  %v1597 = vpop.f32.mrb[0].mxu0
  %1598 = vmatprep.mubr.f32.mxu0 0.0
  %1599 = vmatmul.mubr.f32.gmra.mrb[0].mxu0 %v1359
  %v1600 = vpop.f32.mrb[0].mxu0
  %v1601 = vadd.f32 %v1382, %v1600
  %v1602 = vpop.f32.mrb[0].mxu0
  %1603 = vmatprep.mubr.f32.mxu0 0.0
  %1604 = vmatmul.mubr.f32.gmra.mrb[0].mxu0 %v1360
  %v1605 = vpop.f32.mrb[0].mxu0
  %v1606 = vadd.f32 %v1382, %v1605
  %v1607 = vpop.f32.mrb[0].mxu0
  %1608 = vdwg.mxu0
  %v1609 = vmax.f32 %v1451, 0.0
  %v1610 = vmax.f32 %v1456, 0.0
  %v1611 = vmax.f32 %v1461, 0.0
  %v1612 = vmax.f32 %v1466, 0.0
  %v1613 = vmax.f32 %v1471, 0.0
  %v1614 = vmax.f32 %v1476, 0.0
  %v1615 = vmax.f32 %v1481, 0.0
  %v1616 = vmax.f32 %v1486, 0.0
  %v1617 = vmax.f32 %v1491, 0.0
  %v1618 = vmax.f32 %v1496, 0.0
  %v1619 = vmax.f32 %v1501, 0.0
  %v1620 = vmax.f32 %v1506, 0.0
  %v1621 = vmax.f32 %v1511, 0.0
  %v1622 = vmax.f32 %v1516, 0.0
  %v1623 = vmax.f32 %v1521, 0.0
  %v1624 = vmax.f32 %v1526, 0.0
  %v1625 = vmax.f32 %v1531, 0.0
  %v1626 = vmax.f32 %v1536, 0.0
  %v1627 = vmax.f32 %v1541, 0.0
  %v1628 = vmax.f32 %v1546, 0.0
  %v1629 = vmax.f32 %v1551, 0.0
  %v1630 = vmax.f32 %v1556, 0.0
  %v1631 = vmax.f32 %v1561, 0.0
  %v1632 = vmax.f32 %v1566, 0.0
  %v1633 = vmax.f32 %v1571, 0.0
  %v1634 = vmax.f32 %v1576, 0.0
  %v1635 = vmax.f32 %v1581, 0.0
  %v1636 = vmax.f32 %v1586, 0.0
  %v1637 = vmax.f32 %v1591, 0.0
  %v1638 = vmax.f32 %v1596, 0.0
  %v1639 = vmax.f32 %v1601, 0.0
  %v1640 = vmax.f32 %v1606, 0.0
  %v1641 = vld [vmem:[%s10] sm:$0xff]
  %v1642 = vld [vmem:[%s10 + $0x8] sm:$0xff]
  %v1643 = vld [vmem:[%s10 + $0x10] sm:$0xff]
  %v1644 = vld [vmem:[%s10 + $0x18] sm:$0xff]
  %v1645 = vld [vmem:[%s10 + $0x20] sm:$0xff]
  %v1646 = vld [vmem:[%s10 + $0x28] sm:$0xff]
  %v1647 = vld [vmem:[%s10 + $0x30] sm:$0xff]
  %v1648 = vld [vmem:[%s10 + $0x38] sm:$0xff]
  %v1649 = vld [vmem:[%s10 + $0x40] sm:$0xff]
  %v1650 = vld [vmem:[%s10 + $0x48] sm:$0xff]
  %v1651 = vld [vmem:[%s10 + $0x50] sm:$0xff]
  %v1652 = vld [vmem:[%s10 + $0x58] sm:$0xff]
  %v1653 = vld [vmem:[%s10 + $0x60] sm:$0xff]
  %v1654 = vld [vmem:[%s10 + $0x68] sm:$0xff]
  %v1655 = vld [vmem:[%s10 + $0x70] sm:$0xff]
  %v1656 = vld [vmem:[%s10 + $0x78] sm:$0xff]
  %v1657 = vld [vmem:[%s11] sm:$0x1]
  %v1659 = vlaneseq
  %v1660 = vshrl.u32 %v1659, 7
  %v1661 = vsub.s32 0, %v1660
  %v1662 = vrot.slane %v1657, %v1661
  %1664 = vmatprep.subr.mxu0 0.0
  %1665 = vmatpush1.msra.mxu0 %v1641
  %1666 = vmatprep.subr.mxu0 0.0
  %1667 = vmatpush1.msra.mxu0 %v1642
  %1668 = vmatprep.subr.mxu0 0.0
  %1669 = vmatpush1.msra.mxu0 %v1643
  %1670 = vmatprep.subr.mxu0 0.0
  %1671 = vmatpush1.msra.mxu0 %v1644
  %1672 = vmatprep.subr.mxu0 0.0
  %1673 = vmatpush1.msra.mxu0 %v1645
  %1674 = vmatprep.subr.mxu0 0.0
  %1675 = vmatpush1.msra.mxu0 %v1646
  %1676 = vmatprep.subr.mxu0 0.0
  %1677 = vmatpush1.msra.mxu0 %v1647
  %1678 = vmatprep.subr.mxu0 0.0
  %1679 = vmatpush1.msra.mxu0 %v1648
  %1680 = vmatprep.subr.mxu0 0.0
  %1681 = vmatpush1.msra.mxu0 %v1649
  %1682 = vmatprep.subr.mxu0 0.0
  %1683 = vmatpush1.msra.mxu0 %v1650
  %1684 = vmatprep.subr.mxu0 0.0
  %1685 = vmatpush1.msra.mxu0 %v1651
  %1686 = vmatprep.subr.mxu0 0.0
  %1687 = vmatpush1.msra.mxu0 %v1652
  %1688 = vmatprep.subr.mxu0 0.0
  %1689 = vmatpush1.msra.mxu0 %v1653
  %1690 = vmatprep.subr.mxu0 0.0
  %1691 = vmatpush1.msra.mxu0 %v1654
  %1692 = vmatprep.subr.mxu0 0.0
  %1693 = vmatpush1.msra.mxu0 %v1655
  %1694 = vmatprep.subr.mxu0 0.0
  %1695 = vmatpush1.msra.mxu0 %v1656
  %1696 = vmatprep.subr.mxu0 0.0
  %1697 = vmatpush1.msra.mxu0 0.0
  %1698 = vmatprep.subr.mxu0 0.0
  %1699 = vmatpush1.msra.mxu0 0.0
  %1700 = vmatprep.subr.mxu0 0.0
  %1701 = vmatpush1.msra.mxu0 0.0
  %1702 = vmatprep.subr.mxu0 0.0
  %1703 = vmatpush1.msra.mxu0 0.0
  %1704 = vmatprep.subr.mxu0 0.0
  %1705 = vmatpush1.msra.mxu0 0.0
  %1706 = vmatprep.subr.mxu0 0.0
  %1707 = vmatpush1.msra.mxu0 0.0
  %1708 = vmatprep.subr.mxu0 0.0
  %1709 = vmatpush1.msra.mxu0 0.0
  %1710 = vmatprep.subr.mxu0 0.0
  %1711 = vmatpush1.msra.mxu0 0.0
  %1712 = vmatprep.subr.mxu0 0.0
  %1713 = vmatpush1.msra.mxu0 0.0
  %1714 = vmatprep.subr.mxu0 0.0
  %1715 = vmatpush1.msra.mxu0 0.0
  %1716 = vmatprep.subr.mxu0 0.0
  %1717 = vmatpush1.msra.mxu0 0.0
  %1718 = vmatprep.subr.mxu0 0.0
  %1719 = vmatpush1.msra.mxu0 0.0
  %1720 = vmatprep.subr.mxu0 0.0
  %1721 = vmatpush1.msra.mxu0 0.0
  %1722 = vmatprep.subr.mxu0 0.0
  %1723 = vmatpush1.msra.mxu0 0.0
  %1724 = vmatprep.subr.mxu0 0.0
  %1725 = vmatpush1.msra.mxu0 0.0
  %1726 = vmatprep.subr.mxu0 0.0
  %1727 = vmatpush1.msra.mxu0 0.0
  %1728 = vmatprep.mubr.f32.mxu0 0.0
  %1729 = vmatmul.mubr.f32.gmra.mrb[0].mxu0 %v1609
  %v1730 = vpop.f32.mrb[0].mxu0
  %v1731 = vadd.f32 %v1662, %v1730
  %v1732 = vpop.f32.mrb[0].mxu0
  %1733 = vmatprep.mubr.f32.mxu0 0.0
  %1734 = vmatmul.mubr.f32.gmra.mrb[0].mxu0 %v1610
  %v1735 = vpop.f32.mrb[0].mxu0
  %v1736 = vadd.f32 %v1662, %v1735
  %v1737 = vpop.f32.mrb[0].mxu0
  %1738 = vmatprep.mubr.f32.mxu0 0.0
  %1739 = vmatmul.mubr.f32.gmra.mrb[0].mxu0 %v1611
  %v1740 = vpop.f32.mrb[0].mxu0
  %v1741 = vadd.f32 %v1662, %v1740
  %v1742 = vpop.f32.mrb[0].mxu0
  %1743 = vmatprep.mubr.f32.mxu0 0.0
  %1744 = vmatmul.mubr.f32.gmra.mrb[0].mxu0 %v1612
  %v1745 = vpop.f32.mrb[0].mxu0
  %v1746 = vadd.f32 %v1662, %v1745
  %v1747 = vpop.f32.mrb[0].mxu0
  %1748 = vmatprep.mubr.f32.mxu0 0.0
  %1749 = vmatmul.mubr.f32.gmra.mrb[0].mxu0 %v1613
  %v1750 = vpop.f32.mrb[0].mxu0
  %v1751 = vadd.f32 %v1662, %v1750
  %v1752 = vpop.f32.mrb[0].mxu0
  %1753 = vmatprep.mubr.f32.mxu0 0.0
  %1754 = vmatmul.mubr.f32.gmra.mrb[0].mxu0 %v1614
  %v1755 = vpop.f32.mrb[0].mxu0
  %v1756 = vadd.f32 %v1662, %v1755
  %v1757 = vpop.f32.mrb[0].mxu0
  %1758 = vmatprep.mubr.f32.mxu0 0.0
  %1759 = vmatmul.mubr.f32.gmra.mrb[0].mxu0 %v1615
  %v1760 = vpop.f32.mrb[0].mxu0
  %v1761 = vadd.f32 %v1662, %v1760
  %v1762 = vpop.f32.mrb[0].mxu0
  %1763 = vmatprep.mubr.f32.mxu0 0.0
  %1764 = vmatmul.mubr.f32.gmra.mrb[0].mxu0 %v1616
  %v1765 = vpop.f32.mrb[0].mxu0
  %v1766 = vadd.f32 %v1662, %v1765
  %v1767 = vpop.f32.mrb[0].mxu0
  %1768 = vmatprep.mubr.f32.mxu0 0.0
  %1769 = vmatmul.mubr.f32.gmra.mrb[0].mxu0 %v1617
  %v1770 = vpop.f32.mrb[0].mxu0
  %v1771 = vadd.f32 %v1662, %v1770
  %v1772 = vpop.f32.mrb[0].mxu0
  %1773 = vmatprep.mubr.f32.mxu0 0.0
  %1774 = vmatmul.mubr.f32.gmra.mrb[0].mxu0 %v1618
  %v1775 = vpop.f32.mrb[0].mxu0
  %v1776 = vadd.f32 %v1662, %v1775
  %v1777 = vpop.f32.mrb[0].mxu0
  %1778 = vmatprep.mubr.f32.mxu0 0.0
  %1779 = vmatmul.mubr.f32.gmra.mrb[0].mxu0 %v1619
  %v1780 = vpop.f32.mrb[0].mxu0
  %v1781 = vadd.f32 %v1662, %v1780
  %v1782 = vpop.f32.mrb[0].mxu0
  %1783 = vmatprep.mubr.f32.mxu0 0.0
  %1784 = vmatmul.mubr.f32.gmra.mrb[0].mxu0 %v1620
  %v1785 = vpop.f32.mrb[0].mxu0
  %v1786 = vadd.f32 %v1662, %v1785
  %v1787 = vpop.f32.mrb[0].mxu0
  %1788 = vmatprep.mubr.f32.mxu0 0.0
  %1789 = vmatmul.mubr.f32.gmra.mrb[0].mxu0 %v1621
  %v1790 = vpop.f32.mrb[0].mxu0
  %v1791 = vadd.f32 %v1662, %v1790
  %v1792 = vpop.f32.mrb[0].mxu0
  %1793 = vmatprep.mubr.f32.mxu0 0.0
  %1794 = vmatmul.mubr.f32.gmra.mrb[0].mxu0 %v1622
  %v1795 = vpop.f32.mrb[0].mxu0
  %v1796 = vadd.f32 %v1662, %v1795
  %v1797 = vpop.f32.mrb[0].mxu0
  %1798 = vmatprep.mubr.f32.mxu0 0.0
  %1799 = vmatmul.mubr.f32.gmra.mrb[0].mxu0 %v1623
  %v1800 = vpop.f32.mrb[0].mxu0
  %v1801 = vadd.f32 %v1662, %v1800
  %v1802 = vpop.f32.mrb[0].mxu0
  %1803 = vmatprep.mubr.f32.mxu0 0.0
  %1804 = vmatmul.mubr.f32.gmra.mrb[0].mxu0 %v1624
  %v1805 = vpop.f32.mrb[0].mxu0
  %v1806 = vadd.f32 %v1662, %v1805
  %v1807 = vpop.f32.mrb[0].mxu0
  %1808 = vmatprep.mubr.f32.mxu0 0.0
  %1809 = vmatmul.mubr.f32.gmra.mrb[0].mxu0 %v1625
  %v1810 = vpop.f32.mrb[0].mxu0
  %v1811 = vadd.f32 %v1662, %v1810
  %v1812 = vpop.f32.mrb[0].mxu0
  %1813 = vmatprep.mubr.f32.mxu0 0.0
  %1814 = vmatmul.mubr.f32.gmra.mrb[0].mxu0 %v1626
  %v1815 = vpop.f32.mrb[0].mxu0
  %v1816 = vadd.f32 %v1662, %v1815
  %v1817 = vpop.f32.mrb[0].mxu0
  %1818 = vmatprep.mubr.f32.mxu0 0.0
  %1819 = vmatmul.mubr.f32.gmra.mrb[0].mxu0 %v1627
  %v1820 = vpop.f32.mrb[0].mxu0
  %v1821 = vadd.f32 %v1662, %v1820
  %v1822 = vpop.f32.mrb[0].mxu0
  %1823 = vmatprep.mubr.f32.mxu0 0.0
  %1824 = vmatmul.mubr.f32.gmra.mrb[0].mxu0 %v1628
  %v1825 = vpop.f32.mrb[0].mxu0
  %v1826 = vadd.f32 %v1662, %v1825
  %v1827 = vpop.f32.mrb[0].mxu0
  %1828 = vmatprep.mubr.f32.mxu0 0.0
  %1829 = vmatmul.mubr.f32.gmra.mrb[0].mxu0 %v1629
  %v1830 = vpop.f32.mrb[0].mxu0
  %v1831 = vadd.f32 %v1662, %v1830
  %v1832 = vpop.f32.mrb[0].mxu0
  %1833 = vmatprep.mubr.f32.mxu0 0.0
  %1834 = vmatmul.mubr.f32.gmra.mrb[0].mxu0 %v1630
  %v1835 = vpop.f32.mrb[0].mxu0
  %v1836 = vadd.f32 %v1662, %v1835
  %v1837 = vpop.f32.mrb[0].mxu0
  %1838 = vmatprep.mubr.f32.mxu0 0.0
  %1839 = vmatmul.mubr.f32.gmra.mrb[0].mxu0 %v1631
  %v1840 = vpop.f32.mrb[0].mxu0
  %v1841 = vadd.f32 %v1662, %v1840
  %v1842 = vpop.f32.mrb[0].mxu0
  %1843 = vmatprep.mubr.f32.mxu0 0.0
  %1844 = vmatmul.mubr.f32.gmra.mrb[0].mxu0 %v1632
  %v1845 = vpop.f32.mrb[0].mxu0
  %v1846 = vadd.f32 %v1662, %v1845
  %v1847 = vpop.f32.mrb[0].mxu0
  %1848 = vmatprep.mubr.f32.mxu0 0.0
  %1849 = vmatmul.mubr.f32.gmra.mrb[0].mxu0 %v1633
  %v1850 = vpop.f32.mrb[0].mxu0
  %v1851 = vadd.f32 %v1662, %v1850
  %v1852 = vpop.f32.mrb[0].mxu0
  %1853 = vmatprep.mubr.f32.mxu0 0.0
  %1854 = vmatmul.mubr.f32.gmra.mrb[0].mxu0 %v1634
  %v1855 = vpop.f32.mrb[0].mxu0
  %v1856 = vadd.f32 %v1662, %v1855
  %v1857 = vpop.f32.mrb[0].mxu0
  %1858 = vmatprep.mubr.f32.mxu0 0.0
  %1859 = vmatmul.mubr.f32.gmra.mrb[0].mxu0 %v1635
  %v1860 = vpop.f32.mrb[0].mxu0
  %v1861 = vadd.f32 %v1662, %v1860
  %v1862 = vpop.f32.mrb[0].mxu0
  %1863 = vmatprep.mubr.f32.mxu0 0.0
  %1864 = vmatmul.mubr.f32.gmra.mrb[0].mxu0 %v1636
  %v1865 = vpop.f32.mrb[0].mxu0
  %v1866 = vadd.f32 %v1662, %v1865
  %v1867 = vpop.f32.mrb[0].mxu0
  %1868 = vmatprep.mubr.f32.mxu0 0.0
  %1869 = vmatmul.mubr.f32.gmra.mrb[0].mxu0 %v1637
  %v1870 = vpop.f32.mrb[0].mxu0
  %v1871 = vadd.f32 %v1662, %v1870
  %v1872 = vpop.f32.mrb[0].mxu0
  %1873 = vmatprep.mubr.f32.mxu0 0.0
  %1874 = vmatmul.mubr.f32.gmra.mrb[0].mxu0 %v1638
  %v1875 = vpop.f32.mrb[0].mxu0
  %v1876 = vadd.f32 %v1662, %v1875
  %v1877 = vpop.f32.mrb[0].mxu0
  %1878 = vmatprep.mubr.f32.mxu0 0.0
  %1879 = vmatmul.mubr.f32.gmra.mrb[0].mxu0 %v1639
  %v1880 = vpop.f32.mrb[0].mxu0
  %v1881 = vadd.f32 %v1662, %v1880
  %v1882 = vpop.f32.mrb[0].mxu0
  %1883 = vmatprep.mubr.f32.mxu0 0.0
  %1884 = vmatmul.mubr.f32.gmra.mrb[0].mxu0 %v1640
  %v1885 = vpop.f32.mrb[0].mxu0
  %v1886 = vadd.f32 %v1662, %v1885
  %v1887 = vpop.f32.mrb[0].mxu0
  %1888 = vdwg.mxu0
  %vm1889 = vcmask 31744
  %1890 = vst.msk [vmem:[%s12] sm:$0xff] %vm1889, %v1731
  %1891 = vst.msk [vmem:[%s12 + $0x8] sm:$0xff] %vm1889, %v1736
  %1892 = vst.msk [vmem:[%s12 + $0x10] sm:$0xff] %vm1889, %v1741
  %1893 = vst.msk [vmem:[%s12 + $0x18] sm:$0xff] %vm1889, %v1746
  %1894 = vst.msk [vmem:[%s12 + $0x20] sm:$0xff] %vm1889, %v1751
  %1895 = vst.msk [vmem:[%s12 + $0x28] sm:$0xff] %vm1889, %v1756
  %1896 = vst.msk [vmem:[%s12 + $0x30] sm:$0xff] %vm1889, %v1761
  %1897 = vst.msk [vmem:[%s12 + $0x38] sm:$0xff] %vm1889, %v1766
  %1898 = vst.msk [vmem:[%s12 + $0x40] sm:$0xff] %vm1889, %v1771
  %1899 = vst.msk [vmem:[%s12 + $0x48] sm:$0xff] %vm1889, %v1776
  %1900 = vst.msk [vmem:[%s12 + $0x50] sm:$0xff] %vm1889, %v1781
  %1901 = vst.msk [vmem:[%s12 + $0x58] sm:$0xff] %vm1889, %v1786
  %1902 = vst.msk [vmem:[%s12 + $0x60] sm:$0xff] %vm1889, %v1791
  %1903 = vst.msk [vmem:[%s12 + $0x68] sm:$0xff] %vm1889, %v1796
  %1904 = vst.msk [vmem:[%s12 + $0x70] sm:$0xff] %vm1889, %v1801
  %1905 = vst.msk [vmem:[%s12 + $0x78] sm:$0xff] %vm1889, %v1806
  %1906 = vst.msk [vmem:[%s12 + $0x80] sm:$0xff] %vm1889, %v1811
  %1907 = vst.msk [vmem:[%s12 + $0x88] sm:$0xff] %vm1889, %v1816
  %1908 = vst.msk [vmem:[%s12 + $0x90] sm:$0xff] %vm1889, %v1821
  %1909 = vst.msk [vmem:[%s12 + $0x98] sm:$0xff] %vm1889, %v1826
  %1910 = vst.msk [vmem:[%s12 + $0xa0] sm:$0xff] %vm1889, %v1831
  %1911 = vst.msk [vmem:[%s12 + $0xa8] sm:$0xff] %vm1889, %v1836
  %1912 = vst.msk [vmem:[%s12 + $0xb0] sm:$0xff] %vm1889, %v1841
  %1913 = vst.msk [vmem:[%s12 + $0xb8] sm:$0xff] %vm1889, %v1846
  %1914 = vst.msk [vmem:[%s12 + $0xc0] sm:$0xff] %vm1889, %v1851
  %1915 = vst.msk [vmem:[%s12 + $0xc8] sm:$0xff] %vm1889, %v1856
  %1916 = vst.msk [vmem:[%s12 + $0xd0] sm:$0xff] %vm1889, %v1861
  %1917 = vst.msk [vmem:[%s12 + $0xd8] sm:$0xff] %vm1889, %v1866
  %1918 = vst.msk [vmem:[%s12 + $0xe0] sm:$0xff] %vm1889, %v1871
  %1919 = vst.msk [vmem:[%s12 + $0xe8] sm:$0xff] %vm1889, %v1876
  %1920 = vst.msk [vmem:[%s12 + $0xf0] sm:$0xff] %vm1889, %v1881
  %1921 = vst.msk [vmem:[%s12 + $0xf8] sm:$0xff] %vm1889, %v1886
  // Predicated region
  $region50: #{tpu_custom_call.1} parent=0 // pred_check
    _
  $region51: #{tpu_custom_call.1} parent=0 // pred_check_branch
    %1923 = sbr.rel (0) target = $region53
  $region52: #{tpu_custom_call.1} parent=0 // pred_region
    _
  $region53: #{tpu_custom_call.1} parent=0 // pred_fallthru
    _
  // Predicated region
  $region54: #{tpu_custom_call.1} parent=0 // pred_check
    _
  $region55: #{tpu_custom_call.1} parent=0 // pred_check_branch
    %1925 = sbr.rel (0) target = $region57
  $region56: #{tpu_custom_call.1} parent=0 // pred_region
    _
  $region57: #{tpu_custom_call.1} parent=0 // pred_fallthru
    _

</llo_original>
